<compile_context>
chip_gen: v7x
topology: tpu7x:2x2x1
jax: 0.10.0
libtpu: 0.0.40
codegen_flags: <defaults>
</compile_context>

<pallas_src>
import numpy as np
import jax
import jax.numpy as jnp
from jax.experimental import pallas as pl
from jax.experimental.pallas import tpu as pltpu


_HALO_ROWS = 16  # one bf16 sublane tile; holds the (n_span - 1) extra chunks a tile needs


def _round_up(x, m):
    return (x + m - 1) // m * m


def _cdiv(a, b):
    return -(-a // b)


# ---------------------------------------------------------------------------
# Constant construction (deterministic, matches SpeechBrain math)
# ---------------------------------------------------------------------------

def hamming_window(n_fft):
    # torch.hamming_window(n_fft), periodic=True
    n = np.arange(n_fft, dtype=np.float64)
    return 0.54 - 0.46 * np.cos(2.0 * np.pi * n / n_fft)


def windowed_dft_chunks(n_fft, hop, n_span, n_freq_pad):
    """Hamming-windowed real-DFT matrix, rows zero-padded to n_span*hop so row
    block j multiplies hop-chunk j of a frame; columns are [cos | sin], each
    zero-padded to n_freq_pad lanes (201 -> 256)."""
    n_freq = n_fft // 2 + 1
    n = np.arange(n_fft, dtype=np.float64)[:, None]          # (n_fft, 1)
    k = np.arange(n_freq, dtype=np.float64)[None, :]         # (1, n_freq)
    ang = 2.0 * np.pi * n * k / n_fft
    w = hamming_window(n_fft)[:, None]
    out = np.zeros((n_span * hop, 2 * n_freq_pad), dtype=np.float32)
    out[:n_fft, :n_freq] = np.cos(ang) * w
    out[:n_fft, n_freq_pad:n_freq_pad + n_freq] = np.sin(ang) * w  # sign irrelevant for |X|^2
    return out


def mel_filterbank_matrix(sample_rate, n_fft, n_mels, f_min, f_max,
                          n_freq_pad, n_mels_pad):
    # Matches speechbrain.processing.features.Filterbank (triangular, freeze=True),
    # zero-padded to (n_freq_pad, n_mels_pad) for lane alignment.
    def to_mel(hz):
        return 2595.0 * np.log10(1.0 + hz / 700.0)

    def to_hz(mel):
        return 700.0 * (10.0 ** (mel / 2595.0) - 1.0)

    n_freq = n_fft // 2 + 1
    mel_pts = np.linspace(to_mel(f_min), to_mel(f_max), n_mels + 2)
    hz = to_hz(mel_pts)                                      # (n_mels + 2,)
    band = (hz[1:] - hz[:-1])[:-1]                           # (n_mels,)
    f_central = hz[1:-1]                                     # (n_mels,)
    all_freqs = np.linspace(0.0, sample_rate // 2, n_freq)   # (n_freq,)

    slope = (all_freqs[None, :] - f_central[:, None]) / band[:, None]
    tri = np.maximum(0.0, np.minimum(slope + 1.0, -slope + 1.0))  # (n_mels, n_freq)

    out = np.zeros((n_freq_pad, n_mels_pad), dtype=np.float32)
    out[:n_freq, :n_mels] = tri.T
    return out


# ---------------------------------------------------------------------------
# Pallas kernel: hop-chunk tile (+ halo) -> windowed DFT power -> mel -> dB
# ---------------------------------------------------------------------------

def fbank_kernel(bulk_ref, halo_ref, dft_ref, mel_ref, out_ref):
    # bulk_ref: (tile, hop) bf16 — hop-chunks [t*tile, (t+1)*tile)
    # halo_ref: (16, hop)  bf16 — hop-chunks [(t+1)*tile, (t+1)*tile + 16)
    # dft_ref : (n_span*hop, 2*n_freq_pad) bf16 windowed real-DFT, [cos | sin]
    # mel_ref : (n_freq_pad, n_mels_pad)  bf16 triangular filterbank
    # out_ref : (tile, n_mels_pad)        log-mel dB (before top_db clamp)
    tile, _ = out_ref.shape
    hop = bulk_ref.shape[-1]
    n_span = dft_ref.shape[0] // hop
    n_freq_pad = dft_ref.shape[1] // 2
    cdt = dft_ref.dtype

    # Frame r (local) spans chunk rows r .. r+n_span-1.  The shifted row views are
    # taken in f32 (vanilla (8,128) relayout path, negligible VPU cost) and cast
    # back to bf16 per dot, so HBM traffic stays bf16.
    ctx = jnp.concatenate(
        [bulk_ref[...].astype(jnp.float32), halo_ref[...].astype(jnp.float32)],
        axis=0)                                              # (tile + 16, hop) f32

    y = jnp.dot(ctx[0:tile, :].astype(cdt), dft_ref[0:hop, :],
                preferred_element_type=jnp.float32)          # (tile, 2*n_freq_pad)
    for j in range(1, n_span):
        y = y + jnp.dot(ctx[j:j + tile, :].astype(cdt),
                        dft_ref[j * hop:(j + 1) * hop, :],
                        preferred_element_type=jnp.float32)

    re = y[:, :n_freq_pad]                                   # 128-aligned lane slices
    im = y[:, n_freq_pad:]
    power = re * re + im * im                                # |X|^2 (power=1), f32
    fb = jnp.dot(power.astype(mel_ref.dtype), mel_ref[...],
                 preferred_element_type=jnp.float32)         # (tile, n_mels_pad)
    # amplitude_to_DB core: multiplier=10, db_multiplier=0, amin=1e-10
    out_ref[...] = (10.0 * jnp.log10(jnp.maximum(fb, 1e-10))).astype(out_ref.dtype)


def fbank(wav, *, sample_rate=16000, n_fft=400, n_mels=40, hop_ms=10.0,
          top_db=80.0, tile_rows=1024, compute_dtype=jnp.bfloat16,
          out_dtype=jnp.float32):
    wav = jnp.asarray(wav)
    B, L = wav.shape
    hop = int(round(sample_rate * hop_ms / 1000.0))          # 160
    pad = n_fft // 2                                         # center=True, constant pad
    n_span = _cdiv(n_fft, hop)                               # hop-chunks per frame (3)
    assert n_span - 1 <= _HALO_ROWS, "hop too small relative to n_fft for 16-row halo"
    n_freq_pad = _round_up(n_fft // 2 + 1, 128)              # 201 -> 256
    n_mels_pad = _round_up(n_mels, 128)                      # 40  -> 128
    T = 1 + L // hop                                         # torch.stft frame count

    # Row tiling: large tiles amortize per-grid-step overhead; keep >= 2 grid
    # steps so both v7x TensorCores get work; tiles are multiples of 16.
    tile = min(max(int(tile_rows), 16), _round_up(T, 16))
    if B * _cdiv(T, tile) < 2 and T > 16:
        tile = _cdiv(T, 2)
    tile = _round_up(max(tile, 16), _HALO_ROWS)
    num_tiles = _cdiv(T, tile)
    n_rows = num_tiles * tile + _HALO_ROWS                   # chunk rows incl. halo slack

    dft = jnp.asarray(windowed_dft_chunks(n_fft, hop, n_span, n_freq_pad),
                      dtype=compute_dtype)                   # (n_span*hop, 2*n_freq_pad)
    mel = jnp.asarray(
        mel_filterbank_matrix(sample_rate, n_fft, n_mels, 0.0, sample_rate / 2,
                              n_freq_pad, n_mels_pad),
        dtype=compute_dtype)                                 # (n_freq_pad, n_mels_pad)

    # Lean prep pass (fuses in XLA): f32 -> bf16 cast + center/tail zero-pad; the
    # reshape into hop-sized chunks is free.  Replaces the old frames gather.
    x = jnp.pad(wav.astype(compute_dtype), ((0, 0), (pad, n_rows * hop - pad - L)))
    chunks = x.reshape(B, n_rows, hop)                       # (B, n_rows, hop) bf16

    rows_out = num_tiles * tile
    cost = pl.CostEstimate(
        flops=2 * B * rows_out * (n_span * hop * 2 * n_freq_pad
                                  + n_freq_pad * n_mels_pad),
        transcendentals=B * rows_out * n_mels_pad,
        bytes_accessed=(chunks.size * chunks.dtype.itemsize
                        + dft.size * dft.dtype.itemsize
                        + mel.size * mel.dtype.itemsize
                        + B * rows_out * n_mels_pad * jnp.dtype(out_dtype).itemsize))

    out = pl.pallas_call(
        fbank_kernel,
        out_shape=jax.ShapeDtypeStruct((B, rows_out, n_mels_pad), out_dtype),
        grid=(B, num_tiles),
        in_specs=[
            # bulk hop-chunks of this tile
            pl.BlockSpec((None, tile, hop), lambda b, t: (b, t, 0)),
            # 16-row halo = head of the next tile's chunks (always in bounds)
            pl.BlockSpec((None, _HALO_ROWS, hop),
                         lambda b, t: (b, (t + 1) * (tile // _HALO_ROWS), 0)),
            # resident constants
            pl.BlockSpec((n_span * hop, 2 * n_freq_pad), lambda b, t: (0, 0)),
            pl.BlockSpec((n_freq_pad, n_mels_pad), lambda b, t: (0, 0)),
        ],
        out_specs=pl.BlockSpec((None, tile, n_mels_pad), lambda b, t: (b, t, 0)),
        compiler_params=pltpu.CompilerParams(
            dimension_semantics=("parallel", "parallel"),
            vmem_limit_bytes=32 * 1024 * 1024),
        cost_estimate=cost,
    )(chunks, chunks, dft, mel)

    # Epilogue (XLA): drop row/mel padding *before* the per-utterance max
    # (padded rows are -100 dB), then SpeechBrain's top_db clamp.
    db = out[:, :T, :n_mels].astype(jnp.float32)
    max_db = jnp.max(db, axis=(1, 2), keepdims=True)
    return jnp.maximum(db, max_db - top_db)


# ---------------------------------------------------------------------------
# Pure-JAX float32 reference (true un-quantized SpeechBrain math)
# ---------------------------------------------------------------------------

def frame_signal(wav, n_fft, hop):
    """XLA gather framing (reference only): center zero-pad, hop'd windows."""
    B, L = wav.shape
    pad = n_fft // 2
    x = jnp.pad(wav, ((0, 0), (pad, pad)))
    T = 1 + L // hop
    idx = jnp.arange(T)[:, None] * hop + jnp.arange(n_fft)[None, :]
    return x[:, idx]                                         # (B, T, n_fft)


def fbank_ref(wav, *, sample_rate=16000, n_fft=400, n_mels=40, hop_ms=10.0,
              top_db=80.0):
    hop = int(round(sample_rate * hop_ms / 1000.0))
    n_span = _cdiv(n_fft, hop)
    n_freq_pad = _round_up(n_fft // 2 + 1, 128)
    n_mels_pad = _round_up(n_mels, 128)
    hi = jax.lax.Precision.HIGHEST

    dft = jnp.asarray(windowed_dft_chunks(n_fft, hop, n_span, n_freq_pad)[:n_fft],
                      dtype=jnp.float32)                     # (n_fft, 2*n_freq_pad)
    mel = jnp.asarray(
        mel_filterbank_matrix(sample_rate, n_fft, n_mels, 0.0, sample_rate / 2,
                              n_freq_pad, n_mels_pad),
        dtype=jnp.float32)

    frames = frame_signal(wav.astype(jnp.float32), n_fft, hop)   # (B, T, n_fft) f32
    y = jnp.einsum("btn,nk->btk", frames, dft, precision=hi)
    re, im = y[..., :n_freq_pad], y[..., n_freq_pad:]
    power = re * re + im * im
    fb = jnp.einsum("btf,fm->btm", power, mel, precision=hi)
    db = (10.0 * jnp.log10(jnp.maximum(fb, 1e-10)))[..., :n_mels]
    max_db = jnp.max(db, axis=(1, 2), keepdims=True)
    return jnp.maximum(db, max_db - top_db)


if __name__ == "__main__":
    key = jax.random.PRNGKey(0)
    B, L = 2, 16000                 # -> (2, 101, 40), as in the SpeechBrain docstring
    wav = jax.random.normal(key, (B, L), dtype=jnp.float32)

    feats = jax.block_until_ready(fbank(wav))
    assert feats.shape == (B, 1 + L // 160, 40), feats.shape

    ref = jax.block_until_ready(fbank_ref(wav))
    err = jnp.abs(feats - ref)
    max_err = float(jnp.max(err))
    mean_err = float(jnp.mean(err))
    # bf16 operands (wav, DFT, mel matrices, power cast) leave ~0.05-0.3 dB of
    # quantization noise vs. the true f32 pipeline; structural bugs would be 10s of dB.
    assert max_err < 1.5, f"max |dB| error vs f32 reference: {max_err}"
    assert mean_err < 0.1, f"mean |dB| error vs f32 reference: {mean_err}"

    print("KERNEL_OK")
</pallas_src>

<mosaic_0001>
module attributes {stable_mosaic.version = 11 : i64} {
  func.func @fbank_kernel(%arg0: i32, %arg1: i32, %arg2: memref<1x112x160xbf16, #tpu.memory_space<vmem>>, %arg3: memref<1x16x160xbf16, #tpu.memory_space<vmem>>, %arg4: memref<480x512xbf16, #tpu.memory_space<vmem>>, %arg5: memref<256x128xbf16, #tpu.memory_space<vmem>>, %arg6: memref<1x112x128xf32, #tpu.memory_space<vmem>>) attributes {dimension_semantics = [#tpu.dimension_semantics<parallel>, #tpu.dimension_semantics<parallel>], iteration_bounds = array<i64: 2, 1>, scalar_prefetch = 0 : i64, scratch_operands = 0 : i64, tpu.core_type = #tpu.core_type<tc>, window_params = [{transform_indices = @transform_0, window_bounds = array<i64: 1, 112, 160>}, {transform_indices = @transform_1, window_bounds = array<i64: 1, 16, 160>}, {pipeline_mode = #tpu.pipeline_mode<synchronous>, transform_indices = @transform_2, window_bounds = array<i64: 480, 512>}, {pipeline_mode = #tpu.pipeline_mode<synchronous>, transform_indices = @transform_3, window_bounds = array<i64: 256, 128>}, {transform_indices = @transform_4, window_bounds = array<i64: 1, 112, 128>}]} {
    %c0 = arith.constant 0 : index
    %c0_0 = arith.constant 0 : index
    %c0_1 = arith.constant 0 : index
    %0 = vector.load %arg2[%c0, %c0_0, %c0_1] : memref<1x112x160xbf16, #tpu.memory_space<vmem>>, vector<1x112x160xbf16>
    %1 = vector.shape_cast %0 : vector<1x112x160xbf16> to vector<112x160xbf16>
    %2 = arith.extf %1 : vector<112x160xbf16> to vector<112x160xf32>
    %c0_2 = arith.constant 0 : index
    %c0_3 = arith.constant 0 : index
    %c0_4 = arith.constant 0 : index
    %3 = vector.load %arg3[%c0_2, %c0_3, %c0_4] : memref<1x16x160xbf16, #tpu.memory_space<vmem>>, vector<1x16x160xbf16>
    %4 = vector.shape_cast %3 : vector<1x16x160xbf16> to vector<16x160xbf16>
    %5 = arith.extf %4 : vector<16x160xbf16> to vector<16x160xf32>
    %6 = tpu.concatenate %2, %5 in 0 : vector<112x160xf32>, vector<16x160xf32> -> vector<128x160xf32>
    %7 = vector.extract_strided_slice %6 {offsets = [0, 0], sizes = [112, 160], strides = [1, 1]} : vector<128x160xf32> to vector<112x160xf32>
    %8 = arith.truncf %7 : vector<112x160xf32> to vector<112x160xbf16>
    %c0_5 = arith.constant 0 : index
    %c0_6 = arith.constant 0 : index
    %9 = vector.load %arg4[%c0_5, %c0_6] : memref<480x512xbf16, #tpu.memory_space<vmem>>, vector<160x512xbf16>
    %cst = arith.constant dense<0.000000e+00> : vector<112x512xf32>
    %10 = tpu.matmul %8, %9, %cst {dimension_numbers = #tpu.dot_dimension_numbers<[1], [0], [0], [1], [0, 0, 1, 1], [], []>} : vector<112x160xbf16>, vector<160x512xbf16>, vector<112x512xf32> -> vector<112x512xf32>
    %11 = vector.extract_strided_slice %6 {offsets = [1, 0], sizes = [112, 160], strides = [1, 1]} : vector<128x160xf32> to vector<112x160xf32>
    %12 = arith.truncf %11 : vector<112x160xf32> to vector<112x160xbf16>
    %c160 = arith.constant 160 : index
    %c0_7 = arith.constant 0 : index
    %13 = vector.load %arg4[%c160, %c0_7] : memref<480x512xbf16, #tpu.memory_space<vmem>>, vector<160x512xbf16>
    %cst_8 = arith.constant dense<0.000000e+00> : vector<112x512xf32>
    %14 = tpu.matmul %12, %13, %cst_8 {dimension_numbers = #tpu.dot_dimension_numbers<[1], [0], [0], [1], [0, 0, 1, 1], [], []>} : vector<112x160xbf16>, vector<160x512xbf16>, vector<112x512xf32> -> vector<112x512xf32>
    %15 = arith.addf %10, %14 : vector<112x512xf32>
    %16 = vector.extract_strided_slice %6 {offsets = [2, 0], sizes = [112, 160], strides = [1, 1]} : vector<128x160xf32> to vector<112x160xf32>
    %17 = arith.truncf %16 : vector<112x160xf32> to vector<112x160xbf16>
    %c320 = arith.constant 320 : index
    %c0_9 = arith.constant 0 : index
    %18 = vector.load %arg4[%c320, %c0_9] : memref<480x512xbf16, #tpu.memory_space<vmem>>, vector<160x512xbf16>
    %cst_10 = arith.constant dense<0.000000e+00> : vector<112x512xf32>
    %19 = tpu.matmul %17, %18, %cst_10 {dimension_numbers = #tpu.dot_dimension_numbers<[1], [0], [0], [1], [0, 0, 1, 1], [], []>} : vector<112x160xbf16>, vector<160x512xbf16>, vector<112x512xf32> -> vector<112x512xf32>
    %20 = arith.addf %15, %19 : vector<112x512xf32>
    %21 = vector.extract_strided_slice %20 {offsets = [0, 0], sizes = [112, 256], strides = [1, 1]} : vector<112x512xf32> to vector<112x256xf32>
    %22 = vector.extract_strided_slice %20 {offsets = [0, 256], sizes = [112, 256], strides = [1, 1]} : vector<112x512xf32> to vector<112x256xf32>
    %23 = arith.mulf %21, %21 : vector<112x256xf32>
    %24 = arith.mulf %22, %22 : vector<112x256xf32>
    %25 = arith.addf %23, %24 : vector<112x256xf32>
    %26 = arith.truncf %25 : vector<112x256xf32> to vector<112x256xbf16>
    %c0_11 = arith.constant 0 : index
    %c0_12 = arith.constant 0 : index
    %27 = vector.load %arg5[%c0_11, %c0_12] : memref<256x128xbf16, #tpu.memory_space<vmem>>, vector<256x128xbf16>
    %cst_13 = arith.constant dense<0.000000e+00> : vector<112x128xf32>
    %28 = tpu.matmul %26, %27, %cst_13 {dimension_numbers = #tpu.dot_dimension_numbers<[1], [0], [0], [1], [0, 0, 1, 1], [], []>} : vector<112x256xbf16>, vector<256x128xbf16>, vector<112x128xf32> -> vector<112x128xf32>
    %cst_14 = arith.constant 1.000000e-10 : f32
    %29 = vector.broadcast %cst_14 : f32 to vector<112x128xf32>
    %30 = arith.maximumf %28, %29 : vector<112x128xf32>
    %31 = math.log %30 : vector<112x128xf32>
    %cst_15 = arith.constant 0.434294492 : f32
    %32 = vector.broadcast %cst_15 : f32 to vector<112x128xf32>
    %33 = arith.mulf %31, %32 : vector<112x128xf32>
    %cst_16 = arith.constant 1.000000e+01 : f32
    %34 = vector.broadcast %cst_16 : f32 to vector<112x128xf32>
    %35 = arith.mulf %34, %33 : vector<112x128xf32>
    %c0_17 = arith.constant 0 : index
    %c0_18 = arith.constant 0 : index
    %c0_19 = arith.constant 0 : index
    %36 = vector.load %arg6[%c0_17, %c0_18, %c0_19] : memref<1x112x128xf32, #tpu.memory_space<vmem>>, vector<1x112x128xf32>
    %37 = vector.shape_cast %36 : vector<1x112x128xf32> to vector<112x128xf32>
    %38 = vector.shape_cast %35 : vector<112x128xf32> to vector<1x112x128xf32>
    tpu.vector_store %arg6[%c0_17, %c0_18, %c0_19], %38 {strides = array<i32>} : memref<1x112x128xf32, #tpu.memory_space<vmem>>, vector<1x112x128xf32>,
    return
  }
  func.func @transform_0(%arg0: i32, %arg1: i32) -> (i32, i32, i32) {
    %c0_i32 = arith.constant 0 : i32
    %c0_i32_0 = arith.constant 0 : i32
    return %arg0, %arg1, %c0_i32 : i32, i32, i32
  }
  func.func @transform_1(%arg0: i32, %arg1: i32) -> (i32, i32, i32) {
    %c1_i32 = arith.constant 1 : i32
    %0 = arith.addi %arg1, %c1_i32 : i32
    %c7_i32 = arith.constant 7 : i32
    %1 = arith.muli %0, %c7_i32 : i32
    %c0_i32 = arith.constant 0 : i32
    %c0_i32_0 = arith.constant 0 : i32
    return %arg0, %1, %c0_i32 : i32, i32, i32
  }
  func.func @transform_2(%arg0: i32, %arg1: i32) -> (i32, i32) {
    %c0_i32 = arith.constant 0 : i32
    %c0_i32_0 = arith.constant 0 : i32
    %c0_i32_1 = arith.constant 0 : i32
    return %c0_i32, %c0_i32_0 : i32, i32
  }
  func.func @transform_3(%arg0: i32, %arg1: i32) -> (i32, i32) {
    %c0_i32 = arith.constant 0 : i32
    %c0_i32_0 = arith.constant 0 : i32
    %c0_i32_1 = arith.constant 0 : i32
    return %c0_i32, %c0_i32_0 : i32, i32
  }
  func.func @transform_4(%arg0: i32, %arg1: i32) -> (i32, i32, i32) {
    %c0_i32 = arith.constant 0 : i32
    %c0_i32_0 = arith.constant 0 : i32
    return %arg0, %arg1, %c0_i32 : i32, i32, i32
  }
}

</mosaic_0001>

<llo_original>
// kernel: tpu_custom_call.1
$region0: #{tpu_custom_call.1}
  #allocation0 [shape = 'u32[]', space=smem, size = 0x4, offset = 0x4, fixed_abs, tag = 'smem constant byte address 0x4 - core index']
  #allocation1 [shape = 'u32[144,128]{1,0:T(1,128)}', space=vmem, size = 0x12000, scoped, tag = 'internal scratch']
  %s0 = inlined_call_operand.vmem [shape: bf16[2,128,160], index: 0, kind: input, shape index: {}]
  %s1 = inlined_call_operand.vmem [shape: bf16[2,128,160], index: 1, kind: input, shape index: {}]
  %s2 = inlined_call_operand.hbm [shape: bf16[480,512], index: 2, kind: input, shape index: {}]
  %s3 = inlined_call_operand.vmem [shape: bf16[256,128], index: 3, kind: input, shape index: {}]
  %s4 = inlined_call_operand.hbm [shape: f32[2,112,128], index: 4, kind: output, shape index: {}]
  %s5 = sld [smem:[#allocation0]]
  $region53: #{tpu_custom_call.1} parent=0
    _
  %s7 = ssub.s32 1, %s5
  %s8 = scalar_select 0, %s7, %s5
  $region1: #{tpu_custom_call.1} parent=0
    #allocation2 [shape = 'u8[491520]{0}', space=vmem, size = 0x78000, scoped, tag = 'input window, operand 2, single buffered']
    #allocation3 [shape = 's32[2]{0}', space=sflag, size = 0x8, scoped, tag = 'scoped memory for tpu_custom_call.1']
    #allocation4 [shape = 's32[2]{0}', space=sflag, size = 0x8, scoped, tag = 'scoped memory for tpu_custom_call.1']
    #allocation5 [shape = 'u8[114688]{0}', space=vmem, size = 0x1c000, scoped, tag = 'output window, operand 0']
    %9 = vsyncpa [#allocation3], 0
    %10 = vsyncpa [#allocation4], 0
    %s11 = scalar_lea.sflag [#allocation4], 1
    %12 = vsyncpa %s11, 0
    loop: start=0, step=1, limit=4
    $region2: #{tpu_custom_call.1} parent=1 // loop_pre_header
      _
    $region3: #{tpu_custom_call.1} parent=1 // loop_header
      %s14 = sphi 0, %s18
      %p15 = scmp.ge.s32.totalorder %s14, 4
      %s21 = sphi 0, %s33
      %s22 = sphi 0, %s29
      %s23 = sphi 0, %s21
      %s24 = sphi 0, %s22
      %s25 = sphi 0, %s23
      %s26 = sphi 0, %s24
      %s38 = sphi 0, %s40
      %s41 = sphi 0, %s38
      %s42 = sphi 0, %s41
      %s58 = sphi 0, %s42
      %s70 = sphi 0, %s72
      %s73 = sphi 0, %s70
      %s74 = sphi 0, %s73
      %s90 = sphi 0, %s74
      %s94 = sphi 0, %s94
      %s96 = sphi 0, %s94
      %s97 = sphi 0, %s96
      %s111 = sphi 0, %s97
      %s115 = sphi 0, %s115
      %s117 = sphi 0, %s115
      %s118 = sphi 0, %s117
      %s132 = sphi 0, %s118
      %s140 = sphi 0, %s142
      %s143 = sphi 0, %s140
      %s144 = sphi 0, %s143
      %s160 = sphi 0, %s144
    $region4: #{tpu_custom_call.1} parent=1 // loop_header_branch
      %17 = sbr.rel (%p15) target = $region8
    $region5: #{tpu_custom_call.1} parent=1 // loop_body
      %s19 = ssub.s32 %s14, 1
      %s20 = ssub.s32 %s14, 2
      %s27 = sadd.s32 1, %s22
      %p28 = scmp.ge.s32.totalorder %s27, 1
      %s29 = scalar_select %p28, 0, %s27
      %s30 = sadd.s32 1, %s21
      %s31 = scalar_select %p28, %s30, %s21
      %p32 = scmp.ge.s32.totalorder %s31, 2
      %s33 = scalar_select %p32, 0, %s31
      %s34 = ssub.s32 %s21, %s33
      %s35 = ssub.s32 %s22, %s29
      %s36 = sor.u32 %s34, %s35
      %p37 = scmp.eq.s32.totalorder %s36, 0
      %s39 = sadd.s32 %s38, 1
      %s40 = scalar_select %p37, %s38, %s39
      %p43 = pneg %p37
      %p44 = scmp.eq.s32.totalorder %s14, 1
      %p45 = por %p43, %p44
      %p46 = scmp.ne.s32.totalorder %s38, %s41
      %p47 = scmp.eq.s32.totalorder %s14, 0
      %p48 = por %p46, %p47
      %p49 = scmp.ne.s32.totalorder %s38, %s41
      %p50 = scmp.eq.s32.totalorder %s19, 1
      %p51 = por %p49, %p50
      %p52 = scmp.ne.s32.totalorder %s41, %s42
      %p53 = scmp.eq.s32.totalorder %s19, 0
      %p54 = por %p52, %p53
      %p55 = scmp.ne.s32.totalorder %s41, %s42
      %p56 = scmp.eq.s32.totalorder %s20, 1
      %p57 = por %p55, %p56
      %p59 = scmp.ne.s32.totalorder %s42, %s58
      %p60 = scmp.eq.s32.totalorder %s20, 0
      %p61 = por %p59, %p60
      %s62 = sadd.s32 %s22, 1
      %s63 = smul.u32 %s62, 7
      %s64 = sadd.s32 %s29, 1
      %s65 = smul.u32 %s64, 7
      %s66 = ssub.s32 %s21, %s33
      %s67 = ssub.s32 %s63, %s65
      %s68 = sor.u32 %s66, %s67
      %p69 = scmp.eq.s32.totalorder %s68, 0
      %s71 = sadd.s32 %s70, 1
      %s72 = scalar_select %p69, %s70, %s71
      %p75 = pneg %p69
      %p76 = scmp.eq.s32.totalorder %s14, 1
      %p77 = por %p75, %p76
      %p78 = scmp.ne.s32.totalorder %s70, %s73
      %p79 = scmp.eq.s32.totalorder %s14, 0
      %p80 = por %p78, %p79
      %p81 = scmp.ne.s32.totalorder %s70, %s73
      %p82 = scmp.eq.s32.totalorder %s19, 1
      %p83 = por %p81, %p82
      %p84 = scmp.ne.s32.totalorder %s73, %s74
      %p85 = scmp.eq.s32.totalorder %s19, 0
      %p86 = por %p84, %p85
      %p87 = scmp.ne.s32.totalorder %s73, %s74
      %p88 = scmp.eq.s32.totalorder %s20, 1
      %p89 = por %p87, %p88
      %p91 = scmp.ne.s32.totalorder %s74, %s90
      %p92 = scmp.eq.s32.totalorder %s20, 0
      %p93 = por %p91, %p92
      %s95 = sadd.s32 %s94, 1
      %p98 = scmp.eq.s32.totalorder %s14, 1
      %p99 = scmp.ne.s32.totalorder %s94, %s96
      %p100 = scmp.eq.s32.totalorder %s14, 0
      %p101 = por %p99, %p100
      %p102 = scmp.ne.s32.totalorder %s94, %s96
      %p103 = scmp.eq.s32.totalorder %s19, 1
      %p104 = por %p102, %p103
      %p105 = scmp.ne.s32.totalorder %s96, %s97
      %p106 = scmp.eq.s32.totalorder %s19, 0
      %p107 = por %p105, %p106
      %p108 = scmp.ne.s32.totalorder %s96, %s97
      %p109 = scmp.eq.s32.totalorder %s20, 1
      %p110 = por %p108, %p109
      %p112 = scmp.ne.s32.totalorder %s97, %s111
      %p113 = scmp.eq.s32.totalorder %s20, 0
      %p114 = por %p112, %p113
      %s116 = sadd.s32 %s115, 1
      %p119 = scmp.eq.s32.totalorder %s14, 1
      %p120 = scmp.ne.s32.totalorder %s115, %s117
      %p121 = scmp.eq.s32.totalorder %s14, 0
      %p122 = por %p120, %p121
      %p123 = scmp.ne.s32.totalorder %s115, %s117
      %p124 = scmp.eq.s32.totalorder %s19, 1
      %p125 = por %p123, %p124
      %p126 = scmp.ne.s32.totalorder %s117, %s118
      %p127 = scmp.eq.s32.totalorder %s19, 0
      %p128 = por %p126, %p127
      %p129 = scmp.ne.s32.totalorder %s117, %s118
      %p130 = scmp.eq.s32.totalorder %s20, 1
      %p131 = por %p129, %p130
      %p133 = scmp.ne.s32.totalorder %s118, %s132
      %p134 = scmp.eq.s32.totalorder %s20, 0
      %p135 = por %p133, %p134
      %s136 = ssub.s32 %s21, %s33
      %s137 = ssub.s32 %s22, %s29
      %s138 = sor.u32 %s136, %s137
      %p139 = scmp.eq.s32.totalorder %s138, 0
      %s141 = sadd.s32 %s140, 1
      %s142 = scalar_select %p139, %s140, %s141
      %p145 = pneg %p139
      %p146 = scmp.eq.s32.totalorder %s14, 1
      %p147 = por %p145, %p146
      %p148 = scmp.ne.s32.totalorder %s140, %s143
      %p149 = scmp.eq.s32.totalorder %s14, 0
      %p150 = por %p148, %p149
      %p151 = scmp.ne.s32.totalorder %s140, %s143
      %p152 = scmp.eq.s32.totalorder %s19, 1
      %p153 = por %p151, %p152
      %p154 = scmp.ne.s32.totalorder %s143, %s144
      %p155 = scmp.eq.s32.totalorder %s19, 0
      %p156 = por %p154, %p155
      %p157 = scmp.ne.s32.totalorder %s143, %s144
      %p158 = scmp.eq.s32.totalorder %s20, 1
      %p159 = por %p157, %p158
      %p161 = scmp.ne.s32.totalorder %s144, %s160
      %p162 = scmp.eq.s32.totalorder %s20, 0
      %p163 = por %p161, %p162
      %p164 = scmp.le.s32.totalorder 1, %s14
      %p165 = scmp.lt.s32.totalorder %s14, 3
      %p166 = pnand %p164, %p165
      %p167 = pneg %p166
      // Predicated region
      $region9: #{tpu_custom_call.1} parent=5 // pred_check
        _
      $region10: #{tpu_custom_call.1} parent=5 // pred_check_branch
        %169 = sbr.rel (%p166) target = $region12
      $region11: #{tpu_custom_call.1} parent=5 // pred_region
        %s170 = ssub.s32 %s14, 1
        // Predicated region
        $region13: #{tpu_custom_call.1} parent=11 // pred_check
          %p171 = pneg %p107
        $region14: #{tpu_custom_call.1} parent=11 // pred_check_branch
          %173 = sbr.rel (%p171) target = $region16
        $region15: #{tpu_custom_call.1} parent=11 // pred_region
          %s175 = ssub.s32 15360, 15360
          %176 = vsyncadd [#allocation3], %s175
          %s177 = sshll.u32 [#allocation2], 4
          %s178 = int_to_ptr.vmem [resolvable:$true] %s177
          %183 = dma.hbm_to_vmem [thread:$0]  %s2, 15360, %s178, [#allocation3], 256, 256, 16
        $region16: #{tpu_custom_call.1} parent=11 // pred_fallthru
          _
        // Predicated region
        $region17: #{tpu_custom_call.1} parent=11 // pred_check
          %p184 = pneg %p128
        $region18: #{tpu_custom_call.1} parent=11 // pred_check_branch
          %186 = sbr.rel (%p184) target = $region20
        $region19: #{tpu_custom_call.1} parent=11 // pred_region
          _
        $region20: #{tpu_custom_call.1} parent=11 // pred_fallthru
          _
      $region12: #{tpu_custom_call.1} parent=5 // pred_fallthru
        _
      %p187 = scmp.lt.s32.totalorder %s14, 2
      // Predicated region
      $region21: #{tpu_custom_call.1} parent=5 // pred_check
        %p188 = pneg %p187
      $region22: #{tpu_custom_call.1} parent=5 // pred_check_branch
        %190 = sbr.rel (%p188) target = $region24
      $region23: #{tpu_custom_call.1} parent=5 // pred_region
        // Predicated region
        $region25: #{tpu_custom_call.1} parent=23 // pred_check
          %p191 = pneg %p48
        $region26: #{tpu_custom_call.1} parent=23 // pred_check_branch
          %193 = sbr.rel (%p191) target = $region28
        $region27: #{tpu_custom_call.1} parent=23 // pred_region
          %s194 = smul.u32 14, %s22
          %s195 = ssub.s32 16, %s194
          %p196 = scmp.lt.s32.totalorder %s195, 14
          %s197 = scalar_select %p196, %s195, 14
          %s198 = smul.u32 64, %s197
          %s199 = smul.u32 %s198, 2
          %p200 = scmp.lt.s32.totalorder %s21, 1
          %s201 = scalar_select %p200, %s21, 1
          %p202 = scmp.lt.s32.totalorder %s194, 15
          %s203 = scalar_select %p202, %s194, 15
          %s204 = smul.addr %s203, 2
          %s205 = smul.addr %s201, 32
          %s206 = sadd.s32 %s204, %s205
          %s207 = smul.addr %s206, 4
          %s208 = scalar_lea.vmem %s0, %s207
          %s209 = smul.u32 14, %s22
          %s210 = ssub.s32 16, %s209
          %p211 = scmp.lt.s32.totalorder %s210, 14
          %s212 = scalar_select %p211, %s210, 14
          %s213 = smul.u32 64, %s212
          %s214 = smul.u32 %s213, 2
        $region28: #{tpu_custom_call.1} parent=23 // pred_fallthru
          _
        // Predicated region
        $region29: #{tpu_custom_call.1} parent=23 // pred_check
          %p215 = pneg %p80
        $region30: #{tpu_custom_call.1} parent=23 // pred_check_branch
          %217 = sbr.rel (%p215) target = $region32
        $region31: #{tpu_custom_call.1} parent=23 // pred_region
          %s218 = sadd.s32 %s22, 1
          %s219 = smul.u32 %s218, 7
          %s220 = smul.u32 2, %s219
          %p221 = scmp.lt.s32.totalorder %s21, 1
          %s222 = scalar_select %p221, %s21, 1
          %p223 = scmp.lt.s32.totalorder %s220, 15
          %s224 = scalar_select %p223, %s220, 15
          %s225 = smul.addr %s224, 2
          %s226 = smul.addr %s222, 32
          %s227 = sadd.s32 %s225, %s226
          %s228 = smul.addr %s227, 4
          %s229 = scalar_lea.vmem %s1, %s228
          %s230 = sadd.s32 %s22, 1
          %s231 = smul.u32 %s230, 7
          %s232 = smul.u32 2, %s231
        $region32: #{tpu_custom_call.1} parent=23 // pred_fallthru
          _
      $region24: #{tpu_custom_call.1} parent=5 // pred_fallthru
        _
      %p233 = scmp.le.s32.totalorder 1, %s14
      %p234 = scmp.lt.s32.totalorder %s14, 3
      %p235 = pnand %p233, %p234
      %p236 = pneg %p235
      // Predicated region
      $region33: #{tpu_custom_call.1} parent=5 // pred_check
        _
      $region34: #{tpu_custom_call.1} parent=5 // pred_check_branch
        %238 = sbr.rel (%p235) target = $region36
      $region35: #{tpu_custom_call.1} parent=5 // pred_region
        %s239 = ssub.s32 %s14, 1
        // Predicated region
        $region37: #{tpu_custom_call.1} parent=35 // pred_check
          %p240 = pneg %p107
        $region38: #{tpu_custom_call.1} parent=35 // pred_check_branch
          %242 = sbr.rel (%p240) target = $region40
        $region39: #{tpu_custom_call.1} parent=35 // pred_region
          %243 = dma.done [#allocation3], 15360
        $region40: #{tpu_custom_call.1} parent=35 // pred_fallthru
          _
        %s244 = smul.u32 14, %s24
        %s245 = ssub.s32 16, %s244
        %p246 = scmp.lt.s32.totalorder %s245, 14
        %s247 = scalar_select %p246, %s245, 14
        %s248 = smul.u32 64, %s247
        %s249 = smul.u32 %s248, 2
        %p250 = scmp.lt.s32.totalorder %s23, 1
        %s251 = scalar_select %p250, %s23, 1
        %p252 = scmp.lt.s32.totalorder %s244, 15
        %s253 = scalar_select %p252, %s244, 15
        %s254 = smul.addr %s253, 2
        %s255 = smul.addr %s251, 32
        %s256 = sadd.s32 %s254, %s255
        %s257 = smul.addr %s256, 4
        %s258 = scalar_lea.vmem %s0, %s257
        %p259 = pneg %p54
        %p260 = pneg %p51
        %s261 = sadd.s32 %s24, 1
        %s262 = smul.u32 %s261, 7
        %s263 = smul.u32 2, %s262
        %p264 = scmp.lt.s32.totalorder %s23, 1
        %s265 = scalar_select %p264, %s23, 1
        %p266 = scmp.lt.s32.totalorder %s263, 15
        %s267 = scalar_select %p266, %s263, 15
        %s268 = smul.addr %s267, 2
        %s269 = smul.addr %s265, 32
        %s270 = sadd.s32 %s268, %s269
        %s271 = smul.addr %s270, 4
        %s272 = scalar_lea.vmem %s1, %s271
        %p273 = pneg %p86
        %p274 = pneg %p83
        %p275 = pneg %p107
        %p276 = pneg %p104
        %p277 = pneg %p128
        %p278 = pneg %p125
        %p279 = pneg %p156
        %p280 = pneg %p153
        %s281 = sand.u32 %s143, 1
        %s282 = scalar_lea.sflag [#allocation4], %s281
        %s283 = sand.u32 %s143, 1
        %s284 = smul.addr %s283, 112
        %s285 = scalar_lea.vmem [#allocation5], %s284
        %s286 = smul.u32 14, %s24
        %s287 = ssub.s32 16, %s286
        %p288 = scmp.lt.s32.totalorder %s287, 14
        %s289 = scalar_select %p288, %s287, 14
        %s290 = smul.u32 64, %s289
        %s291 = smul.u32 %s290, 2
        %p292 = scmp.lt.s32.totalorder %s23, 1
        %s293 = scalar_select %p292, %s23, 1
        %p294 = scmp.lt.s32.totalorder %s286, 15
        %s295 = scalar_select %p294, %s286, 15
        %s296 = smul.addr %s295, 2
        %s297 = smul.addr %s293, 32
        %s298 = sadd.s32 %s296, %s297
        %s299 = smul.addr %s298, 4
        %s300 = scalar_lea.vmem %s0, %s299
        %s301 = smul.u32 14, %s24
        %s302 = ssub.s32 16, %s301
        %p303 = scmp.lt.s32.totalorder %s302, 14
        %s304 = scalar_select %p303, %s302, 14
        %s305 = smul.u32 64, %s304
        %s306 = smul.u32 %s305, 2
        %s307 = sadd.s32 %s24, 1
        %s308 = smul.u32 %s307, 7
        %s309 = smul.u32 2, %s308
        %p310 = scmp.lt.s32.totalorder %s23, 1
        %s311 = scalar_select %p310, %s23, 1
        %p312 = scmp.lt.s32.totalorder %s309, 15
        %s313 = scalar_select %p312, %s309, 15
        %s314 = smul.addr %s313, 2
        %s315 = smul.addr %s311, 32
        %s316 = sadd.s32 %s314, %s315
        %s317 = smul.addr %s316, 4
        %s318 = scalar_lea.vmem %s1, %s317
        %s319 = sadd.s32 %s24, 1
        %s320 = smul.u32 %s319, 7
        %s321 = smul.u32 2, %s320
        %s322 = smul.u32 14, %s24
        %v324 = vld [vmem:[%s300] sm:$0xff]
        %v325 = vld [vmem:[%s300 + $0x8] sm:$0xff]
        %v326 = vld [vmem:[%s300 + $0x10] sm:$0xff]
        %v327 = vld [vmem:[%s300 + $0x18] sm:$0xff]
        %v328 = vld [vmem:[%s300 + $0x20] sm:$0xff]
        %v329 = vld [vmem:[%s300 + $0x28] sm:$0xff]
        %v330 = vld [vmem:[%s300 + $0x30] sm:$0xff]
        %v331 = vld [vmem:[%s300 + $0x38] sm:$0xff]
        %v332 = vld [vmem:[%s300 + $0x40] sm:$0xff]
        %v333 = vld [vmem:[%s300 + $0x48] sm:$0xff]
        %v334 = vld [vmem:[%s300 + $0x50] sm:$0xff]
        %v335 = vld [vmem:[%s300 + $0x58] sm:$0xff]
        %v336 = vld [vmem:[%s300 + $0x60] sm:$0xff]
        %v337 = vld [vmem:[%s300 + $0x68] sm:$0xff]
        %v338 = vunpack.c.l.bf16 %v324
        %v339 = vunpack.c.h.bf16 %v324
        %v340 = vunpack.c.l.bf16 %v325
        %v341 = vunpack.c.h.bf16 %v325
        %v342 = vunpack.c.l.bf16 %v326
        %v343 = vunpack.c.h.bf16 %v326
        %v344 = vunpack.c.l.bf16 %v327
        %v345 = vunpack.c.h.bf16 %v327
        %v346 = vunpack.c.l.bf16 %v328
        %v347 = vunpack.c.h.bf16 %v328
        %v348 = vunpack.c.l.bf16 %v329
        %v349 = vunpack.c.h.bf16 %v329
        %v350 = vunpack.c.l.bf16 %v330
        %v351 = vunpack.c.h.bf16 %v330
        %v352 = vunpack.c.l.bf16 %v331
        %v353 = vunpack.c.h.bf16 %v331
        %v354 = vunpack.c.l.bf16 %v332
        %v355 = vunpack.c.h.bf16 %v332
        %v356 = vunpack.c.l.bf16 %v333
        %v357 = vunpack.c.h.bf16 %v333
        %v358 = vunpack.c.l.bf16 %v334
        %v359 = vunpack.c.h.bf16 %v334
        %v360 = vunpack.c.l.bf16 %v335
        %v361 = vunpack.c.h.bf16 %v335
        %v362 = vunpack.c.l.bf16 %v336
        %v363 = vunpack.c.h.bf16 %v336
        %v364 = vunpack.c.l.bf16 %v337
        %v365 = vunpack.c.h.bf16 %v337
        %v366 = vld [vmem:[%s318] sm:$0xff]
        %v367 = vunpack.c.l.bf16 %v366
        %v368 = vunpack.c.h.bf16 %v366
        %v369 = vpack.c.bf16 %v340, %v338
        %v370 = vpack.c.bf16 %v341, %v339
        %v371 = vpack.c.bf16 %v344, %v342
        %v372 = vpack.c.bf16 %v345, %v343
        %v373 = vpack.c.bf16 %v348, %v346
        %v374 = vpack.c.bf16 %v349, %v347
        %v375 = vpack.c.bf16 %v352, %v350
        %v376 = vpack.c.bf16 %v353, %v351
        %v377 = vpack.c.bf16 %v356, %v354
        %v378 = vpack.c.bf16 %v357, %v355
        %v379 = vpack.c.bf16 %v360, %v358
        %v380 = vpack.c.bf16 %v361, %v359
        %v381 = vpack.c.bf16 %v364, %v362
        %v382 = vpack.c.bf16 %v365, %v363
        %v383 = vld [vmem:[#allocation2] sm:$0xff]
        %v384 = vld [vmem:[#allocation2 + $0x8] sm:$0xff]
        %v385 = vld [vmem:[#allocation2 + $0x10] sm:$0xff]
        %v386 = vld [vmem:[#allocation2 + $0x18] sm:$0xff]
        %v387 = vld [vmem:[#allocation2 + $0x20] sm:$0xff]
        %v388 = vld [vmem:[#allocation2 + $0x28] sm:$0xff]
        %v389 = vld [vmem:[#allocation2 + $0x30] sm:$0xff]
        %v390 = vld [vmem:[#allocation2 + $0x38] sm:$0xff]
        %v391 = vld [vmem:[#allocation2 + $0x40] sm:$0xff]
        %v392 = vld [vmem:[#allocation2 + $0x48] sm:$0xff]
        %v393 = vld [vmem:[#allocation2 + $0x50] sm:$0xff]
        %v394 = vld [vmem:[#allocation2 + $0x58] sm:$0xff]
        %v395 = vld [vmem:[#allocation2 + $0x60] sm:$0xff]
        %v396 = vld [vmem:[#allocation2 + $0x68] sm:$0xff]
        %v397 = vld [vmem:[#allocation2 + $0x70] sm:$0xff]
        %v398 = vld [vmem:[#allocation2 + $0x78] sm:$0xff]
        %v399 = vld [vmem:[#allocation2 + $0x80] sm:$0xff]
        %v400 = vld [vmem:[#allocation2 + $0x88] sm:$0xff]
        %v401 = vld [vmem:[#allocation2 + $0x90] sm:$0xff]
        %v402 = vld [vmem:[#allocation2 + $0x98] sm:$0xff]
        %v403 = vld [vmem:[#allocation2 + $0xa0] sm:$0xff]
        %v404 = vld [vmem:[#allocation2 + $0xa8] sm:$0xff]
        %v405 = vld [vmem:[#allocation2 + $0xb0] sm:$0xff]
        %v406 = vld [vmem:[#allocation2 + $0xb8] sm:$0xff]
        %v407 = vld [vmem:[#allocation2 + $0xc0] sm:$0xff]
        %v408 = vld [vmem:[#allocation2 + $0xc8] sm:$0xff]
        %v409 = vld [vmem:[#allocation2 + $0xd0] sm:$0xff]
        %v410 = vld [vmem:[#allocation2 + $0xd8] sm:$0xff]
        %v411 = vld [vmem:[#allocation2 + $0xe0] sm:$0xff]
        %v412 = vld [vmem:[#allocation2 + $0xe8] sm:$0xff]
        %v413 = vld [vmem:[#allocation2 + $0xf0] sm:$0xff]
        %v414 = vld [vmem:[#allocation2 + $0xf8] sm:$0xff]
        %v415 = vld [vmem:[#allocation2 + $0x100] sm:$0xff]
        %v416 = vld [vmem:[#allocation2 + $0x108] sm:$0xff]
        %v417 = vld [vmem:[#allocation2 + $0x110] sm:$0xff]
        %v418 = vld [vmem:[#allocation2 + $0x118] sm:$0xff]
        %v419 = vld [vmem:[#allocation2 + $0x120] sm:$0xff]
        %v420 = vld [vmem:[#allocation2 + $0x128] sm:$0xff]
        %v421 = vld [vmem:[#allocation2 + $0x130] sm:$0xff]
        %v422 = vld [vmem:[#allocation2 + $0x138] sm:$0xff]
        %v423 = vpack.c.bf16 %v367, %v367
        %v424 = vpack.c.bf16 %v368, %v368
        %v425 = vld [vmem:[#allocation2 + $0x140] sm:$0xff]
        %v426 = vld [vmem:[#allocation2 + $0x148] sm:$0xff]
        %v427 = vld [vmem:[#allocation2 + $0x150] sm:$0xff]
        %v428 = vld [vmem:[#allocation2 + $0x158] sm:$0xff]
        %v429 = vld [vmem:[#allocation2 + $0x160] sm:$0xff]
        %v430 = vld [vmem:[#allocation2 + $0x168] sm:$0xff]
        %v431 = vld [vmem:[#allocation2 + $0x170] sm:$0xff]
        %v432 = vld [vmem:[#allocation2 + $0x178] sm:$0xff]
        %v433 = vld [vmem:[#allocation2 + $0x180] sm:$0xff]
        %v434 = vld [vmem:[#allocation2 + $0x188] sm:$0xff]
        %v435 = vld [vmem:[#allocation2 + $0x190] sm:$0xff]
        %v436 = vld [vmem:[#allocation2 + $0x198] sm:$0xff]
        %v437 = vld [vmem:[#allocation2 + $0x1a0] sm:$0xff]
        %v438 = vld [vmem:[#allocation2 + $0x1a8] sm:$0xff]
        %v439 = vld [vmem:[#allocation2 + $0x1b0] sm:$0xff]
        %v440 = vld [vmem:[#allocation2 + $0x1b8] sm:$0xff]
        %v441 = vld [vmem:[#allocation2 + $0x1c0] sm:$0xff]
        %v442 = vld [vmem:[#allocation2 + $0x1c8] sm:$0xff]
        %v443 = vld [vmem:[#allocation2 + $0x1d0] sm:$0xff]
        %v444 = vld [vmem:[#allocation2 + $0x1d8] sm:$0xff]
        %v445 = vld [vmem:[#allocation2 + $0x1e0] sm:$0xff]
        %v446 = vld [vmem:[#allocation2 + $0x1e8] sm:$0xff]
        %v447 = vld [vmem:[#allocation2 + $0x1f0] sm:$0xff]
        %v448 = vld [vmem:[#allocation2 + $0x1f8] sm:$0xff]
        %v449 = vld [vmem:[#allocation2 + $0x200] sm:$0xff]
        %v450 = vld [vmem:[#allocation2 + $0x208] sm:$0xff]
        %v451 = vld [vmem:[#allocation2 + $0x210] sm:$0xff]
        %v452 = vld [vmem:[#allocation2 + $0x218] sm:$0xff]
        %v453 = vld [vmem:[#allocation2 + $0x220] sm:$0xff]
        %v454 = vld [vmem:[#allocation2 + $0x228] sm:$0xff]
        %v455 = vld [vmem:[#allocation2 + $0x230] sm:$0xff]
        %v456 = vld [vmem:[#allocation2 + $0x238] sm:$0xff]
        %v457 = vld [vmem:[#allocation2 + $0x240] sm:$0xff]
        %v458 = vld [vmem:[#allocation2 + $0x248] sm:$0xff]
        %v459 = vld [vmem:[#allocation2 + $0x250] sm:$0xff]
        %v460 = vld [vmem:[#allocation2 + $0x258] sm:$0xff]
        %v461 = vld [vmem:[#allocation2 + $0x260] sm:$0xff]
        %v462 = vld [vmem:[#allocation2 + $0x268] sm:$0xff]
        %v463 = vld [vmem:[#allocation2 + $0x270] sm:$0xff]
        %v464 = vld [vmem:[#allocation2 + $0x278] sm:$0xff]
        %vm465 = vsmask.f32 7424
        %v467 = vshrl.u32 %v369, 16
        %v469 = vshll.u32 %v369, 16
        %v471 = vrot.slane %v469, 1
        %v472 = vor.u32 %v467, %v471
        %v474 = vshll.u32 %v371, 16
        %v476 = vrot.slane %v474, 1
        %v477 = vsel %vm465, %v472, %v476
        %v479 = vshrl.u32 %v370, 16
        %v481 = vshll.u32 %v370, 16
        %v483 = vrot.slane %v481, 1
        %v484 = vor.u32 %v479, %v483
        %v486 = vshll.u32 %v372, 16
        %v488 = vrot.slane %v486, 1
        %v489 = vsel %vm465, %v484, %v488
        %v490 = vshrl.u32 %v371, 16
        %v492 = vor.u32 %v490, %v476
        %v494 = vshll.u32 %v373, 16
        %v496 = vrot.slane %v494, 1
        %v497 = vsel %vm465, %v492, %v496
        %v498 = vshrl.u32 %v372, 16
        %v500 = vor.u32 %v498, %v488
        %v502 = vshll.u32 %v374, 16
        %v504 = vrot.slane %v502, 1
        %v505 = vsel %vm465, %v500, %v504
        %v506 = vshrl.u32 %v373, 16
        %v508 = vor.u32 %v506, %v496
        %v510 = vshll.u32 %v375, 16
        %v512 = vrot.slane %v510, 1
        %v513 = vsel %vm465, %v508, %v512
        %v514 = vshrl.u32 %v374, 16
        %v516 = vor.u32 %v514, %v504
        %v518 = vshll.u32 %v376, 16
        %v520 = vrot.slane %v518, 1
        %v521 = vsel %vm465, %v516, %v520
        %v522 = vshrl.u32 %v375, 16
        %v524 = vor.u32 %v522, %v512
        %v526 = vshll.u32 %v377, 16
        %v528 = vrot.slane %v526, 1
        %v529 = vsel %vm465, %v524, %v528
        %v530 = vshrl.u32 %v376, 16
        %v532 = vor.u32 %v530, %v520
        %v534 = vshll.u32 %v378, 16
        %v536 = vrot.slane %v534, 1
        %v537 = vsel %vm465, %v532, %v536
        %v538 = vshrl.u32 %v377, 16
        %v540 = vor.u32 %v538, %v528
        %v542 = vshll.u32 %v379, 16
        %v544 = vrot.slane %v542, 1
        %v545 = vsel %vm465, %v540, %v544
        %v546 = vshrl.u32 %v378, 16
        %v548 = vor.u32 %v546, %v536
        %v550 = vshll.u32 %v380, 16
        %v552 = vrot.slane %v550, 1
        %v553 = vsel %vm465, %v548, %v552
        %v554 = vshrl.u32 %v379, 16
        %v556 = vor.u32 %v554, %v544
        %v558 = vshll.u32 %v381, 16
        %v560 = vrot.slane %v558, 1
        %v561 = vsel %vm465, %v556, %v560
        %v562 = vshrl.u32 %v380, 16
        %v564 = vor.u32 %v562, %v552
        %v566 = vshll.u32 %v382, 16
        %v568 = vrot.slane %v566, 1
        %v569 = vsel %vm465, %v564, %v568
        %v570 = vshrl.u32 %v381, 16
        %v572 = vor.u32 %v570, %v560
        %v574 = vshll.u32 %v423, 16
        %v576 = vrot.slane %v574, 1
        %v577 = vsel %vm465, %v572, %v576
        %v578 = vshrl.u32 %v382, 16
        %v580 = vor.u32 %v578, %v568
        %v582 = vshll.u32 %v424, 16
        %v584 = vrot.slane %v582, 1
        %v585 = vsel %vm465, %v580, %v584
        %v633 = vunpack.c.l.b16 %v425
        %v634 = vunpack.c.h.b16 %v425
        %v635 = vunpack.c.l.b16 %v426
        %v636 = vunpack.c.h.b16 %v426
        %v637 = vunpack.c.l.b16 %v427
        %v638 = vunpack.c.h.b16 %v427
        %v639 = vunpack.c.l.b16 %v428
        %v640 = vunpack.c.h.b16 %v428
        %v641 = vunpack.c.l.b16 %v429
        %v642 = vunpack.c.h.b16 %v429
        %v643 = vunpack.c.l.b16 %v430
        %v644 = vunpack.c.h.b16 %v430
        %v645 = vunpack.c.l.b16 %v431
        %v646 = vunpack.c.h.b16 %v431
        %v647 = vunpack.c.l.b16 %v432
        %v648 = vunpack.c.h.b16 %v432
        %v649 = vunpack.c.l.b16 %v433
        %v650 = vunpack.c.h.b16 %v433
        %v651 = vunpack.c.l.b16 %v434
        %v652 = vunpack.c.h.b16 %v434
        %v653 = vunpack.c.l.b16 %v435
        %v654 = vunpack.c.h.b16 %v435
        %v655 = vunpack.c.l.b16 %v436
        %v656 = vunpack.c.h.b16 %v436
        %v657 = vunpack.c.l.b16 %v437
        %v658 = vunpack.c.h.b16 %v437
        %v659 = vunpack.c.l.b16 %v438
        %v660 = vunpack.c.h.b16 %v438
        %v661 = vunpack.c.l.b16 %v439
        %v662 = vunpack.c.h.b16 %v439
        %v663 = vunpack.c.l.b16 %v440
        %v664 = vunpack.c.h.b16 %v440
        %v665 = vunpack.c.l.b16 %v441
        %v666 = vunpack.c.h.b16 %v441
        %v667 = vunpack.c.l.b16 %v442
        %v668 = vunpack.c.h.b16 %v442
        %v669 = vunpack.c.l.b16 %v443
        %v670 = vunpack.c.h.b16 %v443
        %v671 = vunpack.c.l.b16 %v444
        %v672 = vunpack.c.h.b16 %v444
        %v673 = vunpack.c.l.b16 %v445
        %v674 = vunpack.c.h.b16 %v445
        %v675 = vunpack.c.l.b16 %v446
        %v676 = vunpack.c.h.b16 %v446
        %v677 = vunpack.c.l.b16 %v447
        %v678 = vunpack.c.h.b16 %v447
        %v679 = vunpack.c.l.b16 %v448
        %v680 = vunpack.c.h.b16 %v448
        %v681 = vunpack.c.l.b16 %v449
        %v682 = vunpack.c.h.b16 %v449
        %v683 = vunpack.c.l.b16 %v450
        %v684 = vunpack.c.h.b16 %v450
        %v685 = vunpack.c.l.b16 %v451
        %v686 = vunpack.c.h.b16 %v451
        %v687 = vunpack.c.l.b16 %v452
        %v688 = vunpack.c.h.b16 %v452
        %v689 = vunpack.c.l.b16 %v453
        %v690 = vunpack.c.h.b16 %v453
        %v691 = vunpack.c.l.b16 %v454
        %v692 = vunpack.c.h.b16 %v454
        %v693 = vunpack.c.l.b16 %v455
        %v694 = vunpack.c.h.b16 %v455
        %v695 = vunpack.c.l.b16 %v456
        %v696 = vunpack.c.h.b16 %v456
        %v697 = vunpack.c.l.b16 %v457
        %v698 = vunpack.c.h.b16 %v457
        %v699 = vunpack.c.l.b16 %v458
        %v700 = vunpack.c.h.b16 %v458
        %v701 = vunpack.c.l.b16 %v459
        %v702 = vunpack.c.h.b16 %v459
        %v703 = vunpack.c.l.b16 %v460
        %v704 = vunpack.c.h.b16 %v460
        %v705 = vunpack.c.l.b16 %v461
        %v706 = vunpack.c.h.b16 %v461
        %v707 = vunpack.c.l.b16 %v462
        %v708 = vunpack.c.h.b16 %v462
        %v709 = vunpack.c.l.b16 %v463
        %v710 = vunpack.c.h.b16 %v463
        %v711 = vunpack.c.l.b16 %v464
        %v712 = vunpack.c.h.b16 %v464
        %v713 = vpack.c.b16 %v637, %v633
        %v714 = vpack.c.b16 %v638, %v634
        %v715 = vpack.c.b16 %v639, %v635
        %v716 = vpack.c.b16 %v640, %v636
        %v717 = vpack.c.b16 %v645, %v641
        %v718 = vpack.c.b16 %v646, %v642
        %v719 = vpack.c.b16 %v647, %v643
        %v720 = vpack.c.b16 %v648, %v644
        %v721 = vpack.c.b16 %v653, %v649
        %v722 = vpack.c.b16 %v654, %v650
        %v723 = vpack.c.b16 %v655, %v651
        %v724 = vpack.c.b16 %v656, %v652
        %v725 = vpack.c.b16 %v661, %v657
        %v726 = vpack.c.b16 %v662, %v658
        %v727 = vpack.c.b16 %v663, %v659
        %v728 = vpack.c.b16 %v664, %v660
        %v729 = vpack.c.b16 %v669, %v665
        %v730 = vpack.c.b16 %v670, %v666
        %v731 = vpack.c.b16 %v671, %v667
        %v732 = vpack.c.b16 %v672, %v668
        %v733 = vpack.c.b16 %v677, %v673
        %v734 = vpack.c.b16 %v678, %v674
        %v735 = vpack.c.b16 %v679, %v675
        %v736 = vpack.c.b16 %v680, %v676
        %v737 = vpack.c.b16 %v685, %v681
        %v738 = vpack.c.b16 %v686, %v682
        %v739 = vpack.c.b16 %v687, %v683
        %v740 = vpack.c.b16 %v688, %v684
        %v741 = vpack.c.b16 %v693, %v689
        %v742 = vpack.c.b16 %v694, %v690
        %v743 = vpack.c.b16 %v695, %v691
        %v744 = vpack.c.b16 %v696, %v692
        %v745 = vpack.c.b16 %v701, %v697
        %v746 = vpack.c.b16 %v702, %v698
        %v747 = vpack.c.b16 %v703, %v699
        %v748 = vpack.c.b16 %v704, %v700
        %v749 = vpack.c.b16 %v709, %v705
        %v750 = vpack.c.b16 %v710, %v706
        %v751 = vpack.c.b16 %v711, %v707
        %v752 = vpack.c.b16 %v712, %v708
        %vm793 = vcmask 261120
        %v795 = vsel %vm793, %v489, 0
        %v798 = vsel %vm793, %v505, 0
        %v801 = vsel %vm793, %v521, 0
        %v804 = vsel %vm793, %v537, 0
        %v807 = vsel %vm793, %v553, 0
        %v810 = vsel %vm793, %v569, 0
        %v813 = vsel %vm793, %v585, 0
        %815 = vmatprep.subr.bf16.mxu0 %v714
        %816 = vmatpush1.bf16.msra.mxu0 %v713
        %817 = vmatprep.subr.bf16.mxu0 %v718
        %818 = vmatpush1.bf16.msra.mxu0 %v717
        %819 = vmatprep.subr.bf16.mxu0 %v722
        %820 = vmatpush1.bf16.msra.mxu0 %v721
        %821 = vmatprep.subr.bf16.mxu0 %v726
        %822 = vmatpush1.bf16.msra.mxu0 %v725
        %823 = vmatprep.subr.bf16.mxu0 %v730
        %824 = vmatpush1.bf16.msra.mxu0 %v729
        %825 = vmatprep.subr.bf16.mxu0 %v734
        %826 = vmatpush1.bf16.msra.mxu0 %v733
        %827 = vmatprep.subr.bf16.mxu0 %v738
        %828 = vmatpush1.bf16.msra.mxu0 %v737
        %829 = vmatprep.subr.bf16.mxu0 %v742
        %830 = vmatpush1.bf16.msra.mxu0 %v741
        %831 = vmatprep.subr.bf16.mxu0 %v746
        %832 = vmatpush1.bf16.msra.mxu0 %v745
        %833 = vmatprep.subr.bf16.mxu0 %v750
        %834 = vmatpush1.bf16.msra.mxu0 %v749
        %835 = vmatprep.subr.bf16.mxu0 0
        %836 = vmatpush1.bf16.msra.mxu0 0
        %837 = vmatprep.subr.bf16.mxu0 0
        %838 = vmatpush1.bf16.msra.mxu0 0
        %839 = vmatprep.subr.bf16.mxu0 0
        %840 = vmatpush1.bf16.msra.mxu0 0
        %841 = vmatprep.subr.bf16.mxu0 0
        %842 = vmatpush1.bf16.msra.mxu0 0
        %843 = vmatprep.subr.bf16.mxu0 0
        %844 = vmatpush1.bf16.msra.mxu0 0
        %845 = vmatprep.subr.bf16.mxu0 0
        %846 = vmatpush1.bf16.msra.mxu0 0
        %847 = vmatprep.mubr.bf16.mxu0 %v795
        %848 = vmatmul.mubr.bf16.gmra.mrb[0].mxu0 %v477
        %v849 = vpop.f32.mrb[0].mxu0
        %v850 = vadd.f32 0.0, %v849
        %v851 = vpop.f32.mrb[0].mxu0
        %v852 = vadd.f32 0.0, %v851
        %v853 = vpop.f32.mrb[0].mxu0
        %v854 = vadd.f32 0.0, %v853
        %v855 = vpop.f32.mrb[0].mxu0
        %v856 = vadd.f32 0.0, %v855
        %857 = vmatprep.mubr.bf16.mxu0 %v798
        %858 = vmatmul.mubr.bf16.gmra.mrb[0].mxu0 %v497
        %v859 = vpop.f32.mrb[0].mxu0
        %v860 = vadd.f32 0.0, %v859
        %v861 = vpop.f32.mrb[0].mxu0
        %v862 = vadd.f32 0.0, %v861
        %v863 = vpop.f32.mrb[0].mxu0
        %v864 = vadd.f32 0.0, %v863
        %v865 = vpop.f32.mrb[0].mxu0
        %v866 = vadd.f32 0.0, %v865
        %867 = vmatprep.mubr.bf16.mxu0 %v801
        %868 = vmatmul.mubr.bf16.gmra.mrb[0].mxu0 %v513
        %v869 = vpop.f32.mrb[0].mxu0
        %v870 = vadd.f32 0.0, %v869
        %v871 = vpop.f32.mrb[0].mxu0
        %v872 = vadd.f32 0.0, %v871
        %v873 = vpop.f32.mrb[0].mxu0
        %v874 = vadd.f32 0.0, %v873
        %v875 = vpop.f32.mrb[0].mxu0
        %v876 = vadd.f32 0.0, %v875
        %877 = vmatprep.mubr.bf16.mxu0 %v804
        %878 = vmatmul.mubr.bf16.gmra.mrb[0].mxu0 %v529
        %v879 = vpop.f32.mrb[0].mxu0
        %v880 = vadd.f32 0.0, %v879
        %v881 = vpop.f32.mrb[0].mxu0
        %v882 = vadd.f32 0.0, %v881
        %v883 = vpop.f32.mrb[0].mxu0
        %v884 = vadd.f32 0.0, %v883
        %v885 = vpop.f32.mrb[0].mxu0
        %v886 = vadd.f32 0.0, %v885
        %887 = vmatprep.mubr.bf16.mxu0 %v807
        %888 = vmatmul.mubr.bf16.gmra.mrb[0].mxu0 %v545
        %v889 = vpop.f32.mrb[0].mxu0
        %v890 = vadd.f32 0.0, %v889
        %v891 = vpop.f32.mrb[0].mxu0
        %v892 = vadd.f32 0.0, %v891
        %v893 = vpop.f32.mrb[0].mxu0
        %v894 = vadd.f32 0.0, %v893
        %v895 = vpop.f32.mrb[0].mxu0
        %v896 = vadd.f32 0.0, %v895
        %897 = vmatprep.mubr.bf16.mxu0 %v810
        %898 = vmatmul.mubr.bf16.gmra.mrb[0].mxu0 %v561
        %v899 = vpop.f32.mrb[0].mxu0
        %v900 = vadd.f32 0.0, %v899
        %v901 = vpop.f32.mrb[0].mxu0
        %v902 = vadd.f32 0.0, %v901
        %v903 = vpop.f32.mrb[0].mxu0
        %v904 = vadd.f32 0.0, %v903
        %v905 = vpop.f32.mrb[0].mxu0
        %v906 = vadd.f32 0.0, %v905
        %907 = vmatprep.mubr.bf16.mxu0 %v813
        %908 = vmatmul.mubr.bf16.gmra.mrb[0].mxu0 %v577
        %v909 = vpop.f32.mrb[0].mxu0
        %v910 = vadd.f32 0.0, %v909
        %v911 = vpop.f32.mrb[0].mxu0
        %v912 = vadd.f32 0.0, %v911
        %v913 = vpop.f32.mrb[0].mxu0
        %v914 = vadd.f32 0.0, %v913
        %v915 = vpop.f32.mrb[0].mxu0
        %v916 = vadd.f32 0.0, %v915
        %917 = vdwg.mxu0
        %918 = vmatprep.subr.bf16.mxu0 %v716
        %919 = vmatpush1.bf16.msra.mxu0 %v715
        %920 = vmatprep.subr.bf16.mxu0 %v720
        %921 = vmatpush1.bf16.msra.mxu0 %v719
        %922 = vmatprep.subr.bf16.mxu0 %v724
        %923 = vmatpush1.bf16.msra.mxu0 %v723
        %924 = vmatprep.subr.bf16.mxu0 %v728
        %925 = vmatpush1.bf16.msra.mxu0 %v727
        %926 = vmatprep.subr.bf16.mxu0 %v732
        %927 = vmatpush1.bf16.msra.mxu0 %v731
        %928 = vmatprep.subr.bf16.mxu0 %v736
        %929 = vmatpush1.bf16.msra.mxu0 %v735
        %930 = vmatprep.subr.bf16.mxu0 %v740
        %931 = vmatpush1.bf16.msra.mxu0 %v739
        %932 = vmatprep.subr.bf16.mxu0 %v744
        %933 = vmatpush1.bf16.msra.mxu0 %v743
        %934 = vmatprep.subr.bf16.mxu0 %v748
        %935 = vmatpush1.bf16.msra.mxu0 %v747
        %936 = vmatprep.subr.bf16.mxu0 %v752
        %937 = vmatpush1.bf16.msra.mxu0 %v751
        %938 = vmatprep.subr.bf16.mxu0 0
        %939 = vmatpush1.bf16.msra.mxu0 0
        %940 = vmatprep.subr.bf16.mxu0 0
        %941 = vmatpush1.bf16.msra.mxu0 0
        %942 = vmatprep.subr.bf16.mxu0 0
        %943 = vmatpush1.bf16.msra.mxu0 0
        %944 = vmatprep.subr.bf16.mxu0 0
        %945 = vmatpush1.bf16.msra.mxu0 0
        %946 = vmatprep.subr.bf16.mxu0 0
        %947 = vmatpush1.bf16.msra.mxu0 0
        %948 = vmatprep.subr.bf16.mxu0 0
        %949 = vmatpush1.bf16.msra.mxu0 0
        %950 = vmatprep.mubr.bf16.mxu0 %v795
        %951 = vmatmul.mubr.bf16.gmra.mrb[0].mxu0 %v477
        %v952 = vpop.f32.mrb[0].mxu0
        %v953 = vadd.f32 0.0, %v952
        %v954 = vpop.f32.mrb[0].mxu0
        %v955 = vadd.f32 0.0, %v954
        %v956 = vpop.f32.mrb[0].mxu0
        %v957 = vadd.f32 0.0, %v956
        %v958 = vpop.f32.mrb[0].mxu0
        %v959 = vadd.f32 0.0, %v958
        %960 = vmatprep.mubr.bf16.mxu0 %v798
        %961 = vmatmul.mubr.bf16.gmra.mrb[0].mxu0 %v497
        %v962 = vpop.f32.mrb[0].mxu0
        %v963 = vadd.f32 0.0, %v962
        %v964 = vpop.f32.mrb[0].mxu0
        %v965 = vadd.f32 0.0, %v964
        %v966 = vpop.f32.mrb[0].mxu0
        %v967 = vadd.f32 0.0, %v966
        %v968 = vpop.f32.mrb[0].mxu0
        %v969 = vadd.f32 0.0, %v968
        %970 = vmatprep.mubr.bf16.mxu0 %v801
        %971 = vmatmul.mubr.bf16.gmra.mrb[0].mxu0 %v513
        %v972 = vpop.f32.mrb[0].mxu0
        %v973 = vadd.f32 0.0, %v972
        %v974 = vpop.f32.mrb[0].mxu0
        %v975 = vadd.f32 0.0, %v974
        %v976 = vpop.f32.mrb[0].mxu0
        %v977 = vadd.f32 0.0, %v976
        %v978 = vpop.f32.mrb[0].mxu0
        %v979 = vadd.f32 0.0, %v978
        %980 = vmatprep.mubr.bf16.mxu0 %v804
        %981 = vmatmul.mubr.bf16.gmra.mrb[0].mxu0 %v529
        %v982 = vpop.f32.mrb[0].mxu0
        %v983 = vadd.f32 0.0, %v982
        %v984 = vpop.f32.mrb[0].mxu0
        %v985 = vadd.f32 0.0, %v984
        %v986 = vpop.f32.mrb[0].mxu0
        %v987 = vadd.f32 0.0, %v986
        %v988 = vpop.f32.mrb[0].mxu0
        %v989 = vadd.f32 0.0, %v988
        %990 = vmatprep.mubr.bf16.mxu0 %v807
        %991 = vmatmul.mubr.bf16.gmra.mrb[0].mxu0 %v545
        %v992 = vpop.f32.mrb[0].mxu0
        %v993 = vadd.f32 0.0, %v992
        %v994 = vpop.f32.mrb[0].mxu0
        %v995 = vadd.f32 0.0, %v994
        %v996 = vpop.f32.mrb[0].mxu0
        %v997 = vadd.f32 0.0, %v996
        %v998 = vpop.f32.mrb[0].mxu0
        %v999 = vadd.f32 0.0, %v998
        %1000 = vmatprep.mubr.bf16.mxu0 %v810
        %1001 = vmatmul.mubr.bf16.gmra.mrb[0].mxu0 %v561
        %v1002 = vpop.f32.mrb[0].mxu0
        %v1003 = vadd.f32 0.0, %v1002
        %v1004 = vpop.f32.mrb[0].mxu0
        %v1005 = vadd.f32 0.0, %v1004
        %v1006 = vpop.f32.mrb[0].mxu0
        %v1007 = vadd.f32 0.0, %v1006
        %v1008 = vpop.f32.mrb[0].mxu0
        %v1009 = vadd.f32 0.0, %v1008
        %1010 = vmatprep.mubr.bf16.mxu0 %v813
        %1011 = vmatmul.mubr.bf16.gmra.mrb[0].mxu0 %v577
        %v1012 = vpop.f32.mrb[0].mxu0
        %v1013 = vadd.f32 0.0, %v1012
        %v1014 = vpop.f32.mrb[0].mxu0
        %v1015 = vadd.f32 0.0, %v1014
        %v1016 = vpop.f32.mrb[0].mxu0
        %v1017 = vadd.f32 0.0, %v1016
        %v1018 = vpop.f32.mrb[0].mxu0
        %v1019 = vadd.f32 0.0, %v1018
        %1020 = vdwg.mxu0
        %v1061 = vunpack.c.l.b16 %v383
        %v1062 = vunpack.c.h.b16 %v383
        %v1063 = vunpack.c.l.b16 %v384
        %v1064 = vunpack.c.h.b16 %v384
        %v1065 = vunpack.c.l.b16 %v385
        %v1066 = vunpack.c.h.b16 %v385
        %v1067 = vunpack.c.l.b16 %v386
        %v1068 = vunpack.c.h.b16 %v386
        %v1069 = vunpack.c.l.b16 %v387
        %v1070 = vunpack.c.h.b16 %v387
        %v1071 = vunpack.c.l.b16 %v388
        %v1072 = vunpack.c.h.b16 %v388
        %v1073 = vunpack.c.l.b16 %v389
        %v1074 = vunpack.c.h.b16 %v389
        %v1075 = vunpack.c.l.b16 %v390
        %v1076 = vunpack.c.h.b16 %v390
        %v1077 = vunpack.c.l.b16 %v391
        %v1078 = vunpack.c.h.b16 %v391
        %v1079 = vunpack.c.l.b16 %v392
        %v1080 = vunpack.c.h.b16 %v392
        %v1081 = vunpack.c.l.b16 %v393
        %v1082 = vunpack.c.h.b16 %v393
        %v1083 = vunpack.c.l.b16 %v394
        %v1084 = vunpack.c.h.b16 %v394
        %v1085 = vunpack.c.l.b16 %v395
        %v1086 = vunpack.c.h.b16 %v395
        %v1087 = vunpack.c.l.b16 %v396
        %v1088 = vunpack.c.h.b16 %v396
        %v1089 = vunpack.c.l.b16 %v397
        %v1090 = vunpack.c.h.b16 %v397
        %v1091 = vunpack.c.l.b16 %v398
        %v1092 = vunpack.c.h.b16 %v398
        %v1093 = vunpack.c.l.b16 %v399
        %v1094 = vunpack.c.h.b16 %v399
        %v1095 = vunpack.c.l.b16 %v400
        %v1096 = vunpack.c.h.b16 %v400
        %v1097 = vunpack.c.l.b16 %v401
        %v1098 = vunpack.c.h.b16 %v401
        %v1099 = vunpack.c.l.b16 %v402
        %v1100 = vunpack.c.h.b16 %v402
        %v1101 = vunpack.c.l.b16 %v403
        %v1102 = vunpack.c.h.b16 %v403
        %v1103 = vunpack.c.l.b16 %v404
        %v1104 = vunpack.c.h.b16 %v404
        %v1105 = vunpack.c.l.b16 %v405
        %v1106 = vunpack.c.h.b16 %v405
        %v1107 = vunpack.c.l.b16 %v406
        %v1108 = vunpack.c.h.b16 %v406
        %v1109 = vunpack.c.l.b16 %v407
        %v1110 = vunpack.c.h.b16 %v407
        %v1111 = vunpack.c.l.b16 %v408
        %v1112 = vunpack.c.h.b16 %v408
        %v1113 = vunpack.c.l.b16 %v409
        %v1114 = vunpack.c.h.b16 %v409
        %v1115 = vunpack.c.l.b16 %v410
        %v1116 = vunpack.c.h.b16 %v410
        %v1117 = vunpack.c.l.b16 %v411
        %v1118 = vunpack.c.h.b16 %v411
        %v1119 = vunpack.c.l.b16 %v412
        %v1120 = vunpack.c.h.b16 %v412
        %v1121 = vunpack.c.l.b16 %v413
        %v1122 = vunpack.c.h.b16 %v413
        %v1123 = vunpack.c.l.b16 %v414
        %v1124 = vunpack.c.h.b16 %v414
        %v1125 = vunpack.c.l.b16 %v415
        %v1126 = vunpack.c.h.b16 %v415
        %v1127 = vunpack.c.l.b16 %v416
        %v1128 = vunpack.c.h.b16 %v416
        %v1129 = vunpack.c.l.b16 %v417
        %v1130 = vunpack.c.h.b16 %v417
        %v1131 = vunpack.c.l.b16 %v418
        %v1132 = vunpack.c.h.b16 %v418
        %v1133 = vunpack.c.l.b16 %v419
        %v1134 = vunpack.c.h.b16 %v419
        %v1135 = vunpack.c.l.b16 %v420
        %v1136 = vunpack.c.h.b16 %v420
        %v1137 = vunpack.c.l.b16 %v421
        %v1138 = vunpack.c.h.b16 %v421
        %v1139 = vunpack.c.l.b16 %v422
        %v1140 = vunpack.c.h.b16 %v422
        %v1141 = vpack.c.b16 %v1065, %v1061
        %v1142 = vpack.c.b16 %v1066, %v1062
        %v1143 = vpack.c.b16 %v1067, %v1063
        %v1144 = vpack.c.b16 %v1068, %v1064
        %v1145 = vpack.c.b16 %v1073, %v1069
        %v1146 = vpack.c.b16 %v1074, %v1070
        %v1147 = vpack.c.b16 %v1075, %v1071
        %v1148 = vpack.c.b16 %v1076, %v1072
        %v1149 = vpack.c.b16 %v1081, %v1077
        %v1150 = vpack.c.b16 %v1082, %v1078
        %v1151 = vpack.c.b16 %v1083, %v1079
        %v1152 = vpack.c.b16 %v1084, %v1080
        %v1153 = vpack.c.b16 %v1089, %v1085
        %v1154 = vpack.c.b16 %v1090, %v1086
        %v1155 = vpack.c.b16 %v1091, %v1087
        %v1156 = vpack.c.b16 %v1092, %v1088
        %v1157 = vpack.c.b16 %v1097, %v1093
        %v1158 = vpack.c.b16 %v1098, %v1094
        %v1159 = vpack.c.b16 %v1099, %v1095
        %v1160 = vpack.c.b16 %v1100, %v1096
        %v1161 = vpack.c.b16 %v1105, %v1101
        %v1162 = vpack.c.b16 %v1106, %v1102
        %v1163 = vpack.c.b16 %v1107, %v1103
        %v1164 = vpack.c.b16 %v1108, %v1104
        %v1165 = vpack.c.b16 %v1113, %v1109
        %v1166 = vpack.c.b16 %v1114, %v1110
        %v1167 = vpack.c.b16 %v1115, %v1111
        %v1168 = vpack.c.b16 %v1116, %v1112
        %v1169 = vpack.c.b16 %v1121, %v1117
        %v1170 = vpack.c.b16 %v1122, %v1118
        %v1171 = vpack.c.b16 %v1123, %v1119
        %v1172 = vpack.c.b16 %v1124, %v1120
        %v1173 = vpack.c.b16 %v1129, %v1125
        %v1174 = vpack.c.b16 %v1130, %v1126
        %v1175 = vpack.c.b16 %v1131, %v1127
        %v1176 = vpack.c.b16 %v1132, %v1128
        %v1177 = vpack.c.b16 %v1137, %v1133
        %v1178 = vpack.c.b16 %v1138, %v1134
        %v1179 = vpack.c.b16 %v1139, %v1135
        %v1180 = vpack.c.b16 %v1140, %v1136
        %v1221 = vsel %vm793, %v370, 0
        %v1223 = vsel %vm793, %v372, 0
        %v1225 = vsel %vm793, %v374, 0
        %v1227 = vsel %vm793, %v376, 0
        %v1229 = vsel %vm793, %v378, 0
        %v1231 = vsel %vm793, %v380, 0
        %v1233 = vsel %vm793, %v382, 0
        %1235 = vmatprep.subr.bf16.mxu0 %v1142
        %1236 = vmatpush1.bf16.msra.mxu0 %v1141
        %1237 = vmatprep.subr.bf16.mxu0 %v1146
        %1238 = vmatpush1.bf16.msra.mxu0 %v1145
        %1239 = vmatprep.subr.bf16.mxu0 %v1150
        %1240 = vmatpush1.bf16.msra.mxu0 %v1149
        %1241 = vmatprep.subr.bf16.mxu0 %v1154
        %1242 = vmatpush1.bf16.msra.mxu0 %v1153
        %1243 = vmatprep.subr.bf16.mxu0 %v1158
        %1244 = vmatpush1.bf16.msra.mxu0 %v1157
        %1245 = vmatprep.subr.bf16.mxu0 %v1162
        %1246 = vmatpush1.bf16.msra.mxu0 %v1161
        %1247 = vmatprep.subr.bf16.mxu0 %v1166
        %1248 = vmatpush1.bf16.msra.mxu0 %v1165
        %1249 = vmatprep.subr.bf16.mxu0 %v1170
        %1250 = vmatpush1.bf16.msra.mxu0 %v1169
        %1251 = vmatprep.subr.bf16.mxu0 %v1174
        %1252 = vmatpush1.bf16.msra.mxu0 %v1173
        %1253 = vmatprep.subr.bf16.mxu0 %v1178
        %1254 = vmatpush1.bf16.msra.mxu0 %v1177
        %1255 = vmatprep.subr.bf16.mxu0 0
        %1256 = vmatpush1.bf16.msra.mxu0 0
        %1257 = vmatprep.subr.bf16.mxu0 0
        %1258 = vmatpush1.bf16.msra.mxu0 0
        %1259 = vmatprep.subr.bf16.mxu0 0
        %1260 = vmatpush1.bf16.msra.mxu0 0
        %1261 = vmatprep.subr.bf16.mxu0 0
        %1262 = vmatpush1.bf16.msra.mxu0 0
        %1263 = vmatprep.subr.bf16.mxu0 0
        %1264 = vmatpush1.bf16.msra.mxu0 0
        %1265 = vmatprep.subr.bf16.mxu0 0
        %1266 = vmatpush1.bf16.msra.mxu0 0
        %1267 = vmatprep.mubr.bf16.mxu0 %v1221
        %1268 = vmatmul.mubr.bf16.gmra.mrb[0].mxu0 %v369
        %v1269 = vpop.f32.mrb[0].mxu0
        %v1270 = vadd.f32 %v850, %v1269
        %v1271 = vpop.f32.mrb[0].mxu0
        %v1272 = vadd.f32 %v852, %v1271
        %v1273 = vpop.f32.mrb[0].mxu0
        %v1274 = vadd.f32 %v854, %v1273
        %v1275 = vpop.f32.mrb[0].mxu0
        %v1276 = vadd.f32 %v856, %v1275
        %1277 = vmatprep.mubr.bf16.mxu0 %v1223
        %1278 = vmatmul.mubr.bf16.gmra.mrb[0].mxu0 %v371
        %v1279 = vpop.f32.mrb[0].mxu0
        %v1280 = vadd.f32 %v860, %v1279
        %v1281 = vpop.f32.mrb[0].mxu0
        %v1282 = vadd.f32 %v862, %v1281
        %v1283 = vpop.f32.mrb[0].mxu0
        %v1284 = vadd.f32 %v864, %v1283
        %v1285 = vpop.f32.mrb[0].mxu0
        %v1286 = vadd.f32 %v866, %v1285
        %1287 = vmatprep.mubr.bf16.mxu0 %v1225
        %1288 = vmatmul.mubr.bf16.gmra.mrb[0].mxu0 %v373
        %v1289 = vpop.f32.mrb[0].mxu0
        %v1290 = vadd.f32 %v870, %v1289
        %v1291 = vpop.f32.mrb[0].mxu0
        %v1292 = vadd.f32 %v872, %v1291
        %v1293 = vpop.f32.mrb[0].mxu0
        %v1294 = vadd.f32 %v874, %v1293
        %v1295 = vpop.f32.mrb[0].mxu0
        %v1296 = vadd.f32 %v876, %v1295
        %1297 = vmatprep.mubr.bf16.mxu0 %v1227
        %1298 = vmatmul.mubr.bf16.gmra.mrb[0].mxu0 %v375
        %v1299 = vpop.f32.mrb[0].mxu0
        %v1300 = vadd.f32 %v880, %v1299
        %v1301 = vpop.f32.mrb[0].mxu0
        %v1302 = vadd.f32 %v882, %v1301
        %v1303 = vpop.f32.mrb[0].mxu0
        %v1304 = vadd.f32 %v884, %v1303
        %v1305 = vpop.f32.mrb[0].mxu0
        %v1306 = vadd.f32 %v886, %v1305
        %1307 = vmatprep.mubr.bf16.mxu0 %v1229
        %1308 = vmatmul.mubr.bf16.gmra.mrb[0].mxu0 %v377
        %v1309 = vpop.f32.mrb[0].mxu0
        %v1310 = vadd.f32 %v890, %v1309
        %v1311 = vpop.f32.mrb[0].mxu0
        %v1312 = vadd.f32 %v892, %v1311
        %v1313 = vpop.f32.mrb[0].mxu0
        %v1314 = vadd.f32 %v894, %v1313
        %v1315 = vpop.f32.mrb[0].mxu0
        %v1316 = vadd.f32 %v896, %v1315
        %1317 = vmatprep.mubr.bf16.mxu0 %v1231
        %1318 = vmatmul.mubr.bf16.gmra.mrb[0].mxu0 %v379
        %v1319 = vpop.f32.mrb[0].mxu0
        %v1320 = vadd.f32 %v900, %v1319
        %v1321 = vpop.f32.mrb[0].mxu0
        %v1322 = vadd.f32 %v902, %v1321
        %v1323 = vpop.f32.mrb[0].mxu0
        %v1324 = vadd.f32 %v904, %v1323
        %v1325 = vpop.f32.mrb[0].mxu0
        %v1326 = vadd.f32 %v906, %v1325
        %1327 = vmatprep.mubr.bf16.mxu0 %v1233
        %1328 = vmatmul.mubr.bf16.gmra.mrb[0].mxu0 %v381
        %v1329 = vpop.f32.mrb[0].mxu0
        %v1330 = vadd.f32 %v910, %v1329
        %v1331 = vpop.f32.mrb[0].mxu0
        %v1332 = vadd.f32 %v912, %v1331
        %v1333 = vpop.f32.mrb[0].mxu0
        %v1334 = vadd.f32 %v914, %v1333
        %v1335 = vpop.f32.mrb[0].mxu0
        %v1336 = vadd.f32 %v916, %v1335
        %1337 = vdwg.mxu0
        %1338 = vmatprep.subr.bf16.mxu0 %v1144
        %1339 = vmatpush1.bf16.msra.mxu0 %v1143
        %1340 = vmatprep.subr.bf16.mxu0 %v1148
        %1341 = vmatpush1.bf16.msra.mxu0 %v1147
        %1342 = vmatprep.subr.bf16.mxu0 %v1152
        %1343 = vmatpush1.bf16.msra.mxu0 %v1151
        %1344 = vmatprep.subr.bf16.mxu0 %v1156
        %1345 = vmatpush1.bf16.msra.mxu0 %v1155
        %1346 = vmatprep.subr.bf16.mxu0 %v1160
        %1347 = vmatpush1.bf16.msra.mxu0 %v1159
        %1348 = vmatprep.subr.bf16.mxu0 %v1164
        %1349 = vmatpush1.bf16.msra.mxu0 %v1163
        %1350 = vmatprep.subr.bf16.mxu0 %v1168
        %1351 = vmatpush1.bf16.msra.mxu0 %v1167
        %1352 = vmatprep.subr.bf16.mxu0 %v1172
        %1353 = vmatpush1.bf16.msra.mxu0 %v1171
        %1354 = vmatprep.subr.bf16.mxu0 %v1176
        %1355 = vmatpush1.bf16.msra.mxu0 %v1175
        %1356 = vmatprep.subr.bf16.mxu0 %v1180
        %1357 = vmatpush1.bf16.msra.mxu0 %v1179
        %1358 = vmatprep.subr.bf16.mxu0 0
        %1359 = vmatpush1.bf16.msra.mxu0 0
        %1360 = vmatprep.subr.bf16.mxu0 0
        %1361 = vmatpush1.bf16.msra.mxu0 0
        %1362 = vmatprep.subr.bf16.mxu0 0
        %1363 = vmatpush1.bf16.msra.mxu0 0
        %1364 = vmatprep.subr.bf16.mxu0 0
        %1365 = vmatpush1.bf16.msra.mxu0 0
        %1366 = vmatprep.subr.bf16.mxu0 0
        %1367 = vmatpush1.bf16.msra.mxu0 0
        %1368 = vmatprep.subr.bf16.mxu0 0
        %1369 = vmatpush1.bf16.msra.mxu0 0
        %1370 = vmatprep.mubr.bf16.mxu0 %v1221
        %1371 = vmatmul.mubr.bf16.gmra.mrb[0].mxu0 %v369
        %v1372 = vpop.f32.mrb[0].mxu0
        %v1373 = vadd.f32 %v953, %v1372
        %v1374 = vpop.f32.mrb[0].mxu0
        %v1375 = vadd.f32 %v955, %v1374
        %v1376 = vpop.f32.mrb[0].mxu0
        %v1377 = vadd.f32 %v957, %v1376
        %v1378 = vpop.f32.mrb[0].mxu0
        %v1379 = vadd.f32 %v959, %v1378
        %1380 = vmatprep.mubr.bf16.mxu0 %v1223
        %1381 = vmatmul.mubr.bf16.gmra.mrb[0].mxu0 %v371
        %v1382 = vpop.f32.mrb[0].mxu0
        %v1383 = vadd.f32 %v963, %v1382
        %v1384 = vpop.f32.mrb[0].mxu0
        %v1385 = vadd.f32 %v965, %v1384
        %v1386 = vpop.f32.mrb[0].mxu0
        %v1387 = vadd.f32 %v967, %v1386
        %v1388 = vpop.f32.mrb[0].mxu0
        %v1389 = vadd.f32 %v969, %v1388
        %1390 = vmatprep.mubr.bf16.mxu0 %v1225
        %1391 = vmatmul.mubr.bf16.gmra.mrb[0].mxu0 %v373
        %v1392 = vpop.f32.mrb[0].mxu0
        %v1393 = vadd.f32 %v973, %v1392
        %v1394 = vpop.f32.mrb[0].mxu0
        %v1395 = vadd.f32 %v975, %v1394
        %v1396 = vpop.f32.mrb[0].mxu0
        %v1397 = vadd.f32 %v977, %v1396
        %v1398 = vpop.f32.mrb[0].mxu0
        %v1399 = vadd.f32 %v979, %v1398
        %1400 = vmatprep.mubr.bf16.mxu0 %v1227
        %1401 = vmatmul.mubr.bf16.gmra.mrb[0].mxu0 %v375
        %v1402 = vpop.f32.mrb[0].mxu0
        %v1403 = vadd.f32 %v983, %v1402
        %v1404 = vpop.f32.mrb[0].mxu0
        %v1405 = vadd.f32 %v985, %v1404
        %v1406 = vpop.f32.mrb[0].mxu0
        %v1407 = vadd.f32 %v987, %v1406
        %v1408 = vpop.f32.mrb[0].mxu0
        %v1409 = vadd.f32 %v989, %v1408
        %1410 = vmatprep.mubr.bf16.mxu0 %v1229
        %1411 = vmatmul.mubr.bf16.gmra.mrb[0].mxu0 %v377
        %v1412 = vpop.f32.mrb[0].mxu0
        %v1413 = vadd.f32 %v993, %v1412
        %v1414 = vpop.f32.mrb[0].mxu0
        %v1415 = vadd.f32 %v995, %v1414
        %v1416 = vpop.f32.mrb[0].mxu0
        %v1417 = vadd.f32 %v997, %v1416
        %v1418 = vpop.f32.mrb[0].mxu0
        %v1419 = vadd.f32 %v999, %v1418
        %1420 = vmatprep.mubr.bf16.mxu0 %v1231
        %1421 = vmatmul.mubr.bf16.gmra.mrb[0].mxu0 %v379
        %v1422 = vpop.f32.mrb[0].mxu0
        %v1423 = vadd.f32 %v1003, %v1422
        %v1424 = vpop.f32.mrb[0].mxu0
        %v1425 = vadd.f32 %v1005, %v1424
        %v1426 = vpop.f32.mrb[0].mxu0
        %v1427 = vadd.f32 %v1007, %v1426
        %v1428 = vpop.f32.mrb[0].mxu0
        %v1429 = vadd.f32 %v1009, %v1428
        %1430 = vmatprep.mubr.bf16.mxu0 %v1233
        %1431 = vmatmul.mubr.bf16.gmra.mrb[0].mxu0 %v381
        %v1432 = vpop.f32.mrb[0].mxu0
        %v1433 = vadd.f32 %v1013, %v1432
        %v1434 = vpop.f32.mrb[0].mxu0
        %v1435 = vadd.f32 %v1015, %v1434
        %v1436 = vpop.f32.mrb[0].mxu0
        %v1437 = vadd.f32 %v1017, %v1436
        %v1438 = vpop.f32.mrb[0].mxu0
        %v1439 = vadd.f32 %v1019, %v1438
        %1440 = vdwg.mxu0
        %v1441 = vld [vmem:[#allocation2 + $0x280] sm:$0xff]
        %v1442 = vld [vmem:[#allocation2 + $0x288] sm:$0xff]
        %v1443 = vld [vmem:[#allocation2 + $0x290] sm:$0xff]
        %v1444 = vld [vmem:[#allocation2 + $0x298] sm:$0xff]
        %v1445 = vld [vmem:[#allocation2 + $0x2a0] sm:$0xff]
        %v1446 = vld [vmem:[#allocation2 + $0x2a8] sm:$0xff]
        %v1447 = vld [vmem:[#allocation2 + $0x2b0] sm:$0xff]
        %v1448 = vld [vmem:[#allocation2 + $0x2b8] sm:$0xff]
        %v1449 = vld [vmem:[#allocation2 + $0x2c0] sm:$0xff]
        %v1450 = vld [vmem:[#allocation2 + $0x2c8] sm:$0xff]
        %v1451 = vld [vmem:[#allocation2 + $0x2d0] sm:$0xff]
        %v1452 = vld [vmem:[#allocation2 + $0x2d8] sm:$0xff]
        %v1453 = vld [vmem:[#allocation2 + $0x2e0] sm:$0xff]
        %v1454 = vld [vmem:[#allocation2 + $0x2e8] sm:$0xff]
        %v1455 = vld [vmem:[#allocation2 + $0x2f0] sm:$0xff]
        %v1456 = vld [vmem:[#allocation2 + $0x2f8] sm:$0xff]
        %v1457 = vld [vmem:[#allocation2 + $0x300] sm:$0xff]
        %v1458 = vld [vmem:[#allocation2 + $0x308] sm:$0xff]
        %v1459 = vld [vmem:[#allocation2 + $0x310] sm:$0xff]
        %v1460 = vld [vmem:[#allocation2 + $0x318] sm:$0xff]
        %v1461 = vld [vmem:[#allocation2 + $0x320] sm:$0xff]
        %v1462 = vld [vmem:[#allocation2 + $0x328] sm:$0xff]
        %v1463 = vld [vmem:[#allocation2 + $0x330] sm:$0xff]
        %v1464 = vld [vmem:[#allocation2 + $0x338] sm:$0xff]
        %v1465 = vld [vmem:[#allocation2 + $0x340] sm:$0xff]
        %v1466 = vld [vmem:[#allocation2 + $0x348] sm:$0xff]
        %v1467 = vld [vmem:[#allocation2 + $0x350] sm:$0xff]
        %v1468 = vld [vmem:[#allocation2 + $0x358] sm:$0xff]
        %v1469 = vld [vmem:[#allocation2 + $0x360] sm:$0xff]
        %v1470 = vld [vmem:[#allocation2 + $0x368] sm:$0xff]
        %v1471 = vld [vmem:[#allocation2 + $0x370] sm:$0xff]
        %v1472 = vld [vmem:[#allocation2 + $0x378] sm:$0xff]
        %v1473 = vld [vmem:[#allocation2 + $0x380] sm:$0xff]
        %v1474 = vld [vmem:[#allocation2 + $0x388] sm:$0xff]
        %v1475 = vld [vmem:[#allocation2 + $0x390] sm:$0xff]
        %v1476 = vld [vmem:[#allocation2 + $0x398] sm:$0xff]
        %v1477 = vld [vmem:[#allocation2 + $0x3a0] sm:$0xff]
        %v1478 = vld [vmem:[#allocation2 + $0x3a8] sm:$0xff]
        %v1479 = vld [vmem:[#allocation2 + $0x3b0] sm:$0xff]
        %v1480 = vld [vmem:[#allocation2 + $0x3b8] sm:$0xff]
        %vm1497 = vcmask 1046528
        %v1498 = vrot.slane %v369, 1
        %v1499 = vrot.slane %v371, 1
        %v1500 = vsel %vm1497, %v1498, %v1499
        %v1501 = vrot.slane %v370, 1
        %v1502 = vrot.slane %v372, 1
        %v1503 = vsel %vm1497, %v1501, %v1502
        %v1504 = vrot.slane %v373, 1
        %v1505 = vsel %vm1497, %v1499, %v1504
        %v1506 = vrot.slane %v374, 1
        %v1507 = vsel %vm1497, %v1502, %v1506
        %v1508 = vrot.slane %v375, 1
        %v1509 = vsel %vm1497, %v1504, %v1508
        %v1510 = vrot.slane %v376, 1
        %v1511 = vsel %vm1497, %v1506, %v1510
        %v1512 = vrot.slane %v377, 1
        %v1513 = vsel %vm1497, %v1508, %v1512
        %v1514 = vrot.slane %v378, 1
        %v1515 = vsel %vm1497, %v1510, %v1514
        %v1516 = vrot.slane %v379, 1
        %v1517 = vsel %vm1497, %v1512, %v1516
        %v1518 = vrot.slane %v380, 1
        %v1519 = vsel %vm1497, %v1514, %v1518
        %v1520 = vrot.slane %v381, 1
        %v1521 = vsel %vm1497, %v1516, %v1520
        %v1522 = vrot.slane %v382, 1
        %v1523 = vsel %vm1497, %v1518, %v1522
        %v1524 = vrot.slane %v423, 1
        %v1525 = vsel %vm1497, %v1520, %v1524
        %v1526 = vrot.slane %v424, 1
        %v1527 = vsel %vm1497, %v1522, %v1526
        %v1575 = vunpack.c.l.b16 %v1441
        %v1576 = vunpack.c.h.b16 %v1441
        %v1577 = vunpack.c.l.b16 %v1442
        %v1578 = vunpack.c.h.b16 %v1442
        %v1579 = vunpack.c.l.b16 %v1443
        %v1580 = vunpack.c.h.b16 %v1443
        %v1581 = vunpack.c.l.b16 %v1444
        %v1582 = vunpack.c.h.b16 %v1444
        %v1583 = vunpack.c.l.b16 %v1445
        %v1584 = vunpack.c.h.b16 %v1445
        %v1585 = vunpack.c.l.b16 %v1446
        %v1586 = vunpack.c.h.b16 %v1446
        %v1587 = vunpack.c.l.b16 %v1447
        %v1588 = vunpack.c.h.b16 %v1447
        %v1589 = vunpack.c.l.b16 %v1448
        %v1590 = vunpack.c.h.b16 %v1448
        %v1591 = vunpack.c.l.b16 %v1449
        %v1592 = vunpack.c.h.b16 %v1449
        %v1593 = vunpack.c.l.b16 %v1450
        %v1594 = vunpack.c.h.b16 %v1450
        %v1595 = vunpack.c.l.b16 %v1451
        %v1596 = vunpack.c.h.b16 %v1451
        %v1597 = vunpack.c.l.b16 %v1452
        %v1598 = vunpack.c.h.b16 %v1452
        %v1599 = vunpack.c.l.b16 %v1453
        %v1600 = vunpack.c.h.b16 %v1453
        %v1601 = vunpack.c.l.b16 %v1454
        %v1602 = vunpack.c.h.b16 %v1454
        %v1603 = vunpack.c.l.b16 %v1455
        %v1604 = vunpack.c.h.b16 %v1455
        %v1605 = vunpack.c.l.b16 %v1456
        %v1606 = vunpack.c.h.b16 %v1456
        %v1607 = vunpack.c.l.b16 %v1457
        %v1608 = vunpack.c.h.b16 %v1457
        %v1609 = vunpack.c.l.b16 %v1458
        %v1610 = vunpack.c.h.b16 %v1458
        %v1611 = vunpack.c.l.b16 %v1459
        %v1612 = vunpack.c.h.b16 %v1459
        %v1613 = vunpack.c.l.b16 %v1460
        %v1614 = vunpack.c.h.b16 %v1460
        %v1615 = vunpack.c.l.b16 %v1461
        %v1616 = vunpack.c.h.b16 %v1461
        %v1617 = vunpack.c.l.b16 %v1462
        %v1618 = vunpack.c.h.b16 %v1462
        %v1619 = vunpack.c.l.b16 %v1463
        %v1620 = vunpack.c.h.b16 %v1463
        %v1621 = vunpack.c.l.b16 %v1464
        %v1622 = vunpack.c.h.b16 %v1464
        %v1623 = vunpack.c.l.b16 %v1465
        %v1624 = vunpack.c.h.b16 %v1465
        %v1625 = vunpack.c.l.b16 %v1466
        %v1626 = vunpack.c.h.b16 %v1466
        %v1627 = vunpack.c.l.b16 %v1467
        %v1628 = vunpack.c.h.b16 %v1467
        %v1629 = vunpack.c.l.b16 %v1468
        %v1630 = vunpack.c.h.b16 %v1468
        %v1631 = vunpack.c.l.b16 %v1469
        %v1632 = vunpack.c.h.b16 %v1469
        %v1633 = vunpack.c.l.b16 %v1470
        %v1634 = vunpack.c.h.b16 %v1470
        %v1635 = vunpack.c.l.b16 %v1471
        %v1636 = vunpack.c.h.b16 %v1471
        %v1637 = vunpack.c.l.b16 %v1472
        %v1638 = vunpack.c.h.b16 %v1472
        %v1639 = vunpack.c.l.b16 %v1473
        %v1640 = vunpack.c.h.b16 %v1473
        %v1641 = vunpack.c.l.b16 %v1474
        %v1642 = vunpack.c.h.b16 %v1474
        %v1643 = vunpack.c.l.b16 %v1475
        %v1644 = vunpack.c.h.b16 %v1475
        %v1645 = vunpack.c.l.b16 %v1476
        %v1646 = vunpack.c.h.b16 %v1476
        %v1647 = vunpack.c.l.b16 %v1477
        %v1648 = vunpack.c.h.b16 %v1477
        %v1649 = vunpack.c.l.b16 %v1478
        %v1650 = vunpack.c.h.b16 %v1478
        %v1651 = vunpack.c.l.b16 %v1479
        %v1652 = vunpack.c.h.b16 %v1479
        %v1653 = vunpack.c.l.b16 %v1480
        %v1654 = vunpack.c.h.b16 %v1480
        %v1655 = vpack.c.b16 %v1579, %v1575
        %v1656 = vpack.c.b16 %v1580, %v1576
        %v1657 = vpack.c.b16 %v1581, %v1577
        %v1658 = vpack.c.b16 %v1582, %v1578
        %v1659 = vpack.c.b16 %v1587, %v1583
        %v1660 = vpack.c.b16 %v1588, %v1584
        %v1661 = vpack.c.b16 %v1589, %v1585
        %v1662 = vpack.c.b16 %v1590, %v1586
        %v1663 = vpack.c.b16 %v1595, %v1591
        %v1664 = vpack.c.b16 %v1596, %v1592
        %v1665 = vpack.c.b16 %v1597, %v1593
        %v1666 = vpack.c.b16 %v1598, %v1594
        %v1667 = vpack.c.b16 %v1603, %v1599
        %v1668 = vpack.c.b16 %v1604, %v1600
        %v1669 = vpack.c.b16 %v1605, %v1601
        %v1670 = vpack.c.b16 %v1606, %v1602
        %v1671 = vpack.c.b16 %v1611, %v1607
        %v1672 = vpack.c.b16 %v1612, %v1608
        %v1673 = vpack.c.b16 %v1613, %v1609
        %v1674 = vpack.c.b16 %v1614, %v1610
        %v1675 = vpack.c.b16 %v1619, %v1615
        %v1676 = vpack.c.b16 %v1620, %v1616
        %v1677 = vpack.c.b16 %v1621, %v1617
        %v1678 = vpack.c.b16 %v1622, %v1618
        %v1679 = vpack.c.b16 %v1627, %v1623
        %v1680 = vpack.c.b16 %v1628, %v1624
        %v1681 = vpack.c.b16 %v1629, %v1625
        %v1682 = vpack.c.b16 %v1630, %v1626
        %v1683 = vpack.c.b16 %v1635, %v1631
        %v1684 = vpack.c.b16 %v1636, %v1632
        %v1685 = vpack.c.b16 %v1637, %v1633
        %v1686 = vpack.c.b16 %v1638, %v1634
        %v1687 = vpack.c.b16 %v1643, %v1639
        %v1688 = vpack.c.b16 %v1644, %v1640
        %v1689 = vpack.c.b16 %v1645, %v1641
        %v1690 = vpack.c.b16 %v1646, %v1642
        %v1691 = vpack.c.b16 %v1651, %v1647
        %v1692 = vpack.c.b16 %v1652, %v1648
        %v1693 = vpack.c.b16 %v1653, %v1649
        %v1694 = vpack.c.b16 %v1654, %v1650
        %v1736 = vsel %vm793, %v1503, 0
        %v1739 = vsel %vm793, %v1507, 0
        %v1742 = vsel %vm793, %v1511, 0
        %v1745 = vsel %vm793, %v1515, 0
        %v1748 = vsel %vm793, %v1519, 0
        %v1751 = vsel %vm793, %v1523, 0
        %v1754 = vsel %vm793, %v1527, 0
        %1756 = vmatprep.subr.bf16.mxu0 %v1656
        %1757 = vmatpush1.bf16.msra.mxu0 %v1655
        %1758 = vmatprep.subr.bf16.mxu0 %v1660
        %1759 = vmatpush1.bf16.msra.mxu0 %v1659
        %1760 = vmatprep.subr.bf16.mxu0 %v1664
        %1761 = vmatpush1.bf16.msra.mxu0 %v1663
        %1762 = vmatprep.subr.bf16.mxu0 %v1668
        %1763 = vmatpush1.bf16.msra.mxu0 %v1667
        %1764 = vmatprep.subr.bf16.mxu0 %v1672
        %1765 = vmatpush1.bf16.msra.mxu0 %v1671
        %1766 = vmatprep.subr.bf16.mxu0 %v1676
        %1767 = vmatpush1.bf16.msra.mxu0 %v1675
        %1768 = vmatprep.subr.bf16.mxu0 %v1680
        %1769 = vmatpush1.bf16.msra.mxu0 %v1679
        %1770 = vmatprep.subr.bf16.mxu0 %v1684
        %1771 = vmatpush1.bf16.msra.mxu0 %v1683
        %1772 = vmatprep.subr.bf16.mxu0 %v1688
        %1773 = vmatpush1.bf16.msra.mxu0 %v1687
        %1774 = vmatprep.subr.bf16.mxu0 %v1692
        %1775 = vmatpush1.bf16.msra.mxu0 %v1691
        %1776 = vmatprep.subr.bf16.mxu0 0
        %1777 = vmatpush1.bf16.msra.mxu0 0
        %1778 = vmatprep.subr.bf16.mxu0 0
        %1779 = vmatpush1.bf16.msra.mxu0 0
        %1780 = vmatprep.subr.bf16.mxu0 0
        %1781 = vmatpush1.bf16.msra.mxu0 0
        %1782 = vmatprep.subr.bf16.mxu0 0
        %1783 = vmatpush1.bf16.msra.mxu0 0
        %1784 = vmatprep.subr.bf16.mxu0 0
        %1785 = vmatpush1.bf16.msra.mxu0 0
        %1786 = vmatprep.subr.bf16.mxu0 0
        %1787 = vmatpush1.bf16.msra.mxu0 0
        %1788 = vmatprep.mubr.bf16.mxu0 %v1736
        %1789 = vmatmul.mubr.bf16.gmra.mrb[0].mxu0 %v1500
        %v1790 = vpop.f32.mrb[0].mxu0
        %v1791 = vadd.f32 0.0, %v1790
        %v1792 = vpop.f32.mrb[0].mxu0
        %v1793 = vadd.f32 0.0, %v1792
        %v1794 = vpop.f32.mrb[0].mxu0
        %v1795 = vadd.f32 0.0, %v1794
        %v1796 = vpop.f32.mrb[0].mxu0
        %v1797 = vadd.f32 0.0, %v1796
        %1798 = vmatprep.mubr.bf16.mxu0 %v1739
        %1799 = vmatmul.mubr.bf16.gmra.mrb[0].mxu0 %v1505
        %v1800 = vpop.f32.mrb[0].mxu0
        %v1801 = vadd.f32 0.0, %v1800
        %v1802 = vpop.f32.mrb[0].mxu0
        %v1803 = vadd.f32 0.0, %v1802
        %v1804 = vpop.f32.mrb[0].mxu0
        %v1805 = vadd.f32 0.0, %v1804
        %v1806 = vpop.f32.mrb[0].mxu0
        %v1807 = vadd.f32 0.0, %v1806
        %1808 = vmatprep.mubr.bf16.mxu0 %v1742
        %1809 = vmatmul.mubr.bf16.gmra.mrb[0].mxu0 %v1509
        %v1810 = vpop.f32.mrb[0].mxu0
        %v1811 = vadd.f32 0.0, %v1810
        %v1812 = vpop.f32.mrb[0].mxu0
        %v1813 = vadd.f32 0.0, %v1812
        %v1814 = vpop.f32.mrb[0].mxu0
        %v1815 = vadd.f32 0.0, %v1814
        %v1816 = vpop.f32.mrb[0].mxu0
        %v1817 = vadd.f32 0.0, %v1816
        %1818 = vmatprep.mubr.bf16.mxu0 %v1745
        %1819 = vmatmul.mubr.bf16.gmra.mrb[0].mxu0 %v1513
        %v1820 = vpop.f32.mrb[0].mxu0
        %v1821 = vadd.f32 0.0, %v1820
        %v1822 = vpop.f32.mrb[0].mxu0
        %v1823 = vadd.f32 0.0, %v1822
        %v1824 = vpop.f32.mrb[0].mxu0
        %v1825 = vadd.f32 0.0, %v1824
        %v1826 = vpop.f32.mrb[0].mxu0
        %v1827 = vadd.f32 0.0, %v1826
        %1828 = vmatprep.mubr.bf16.mxu0 %v1748
        %1829 = vmatmul.mubr.bf16.gmra.mrb[0].mxu0 %v1517
        %v1830 = vpop.f32.mrb[0].mxu0
        %v1831 = vadd.f32 0.0, %v1830
        %v1832 = vpop.f32.mrb[0].mxu0
        %v1833 = vadd.f32 0.0, %v1832
        %v1834 = vpop.f32.mrb[0].mxu0
        %v1835 = vadd.f32 0.0, %v1834
        %v1836 = vpop.f32.mrb[0].mxu0
        %v1837 = vadd.f32 0.0, %v1836
        %1838 = vmatprep.mubr.bf16.mxu0 %v1751
        %1839 = vmatmul.mubr.bf16.gmra.mrb[0].mxu0 %v1521
        %v1840 = vpop.f32.mrb[0].mxu0
        %v1841 = vadd.f32 0.0, %v1840
        %v1842 = vpop.f32.mrb[0].mxu0
        %v1843 = vadd.f32 0.0, %v1842
        %v1844 = vpop.f32.mrb[0].mxu0
        %v1845 = vadd.f32 0.0, %v1844
        %v1846 = vpop.f32.mrb[0].mxu0
        %v1847 = vadd.f32 0.0, %v1846
        %1848 = vmatprep.mubr.bf16.mxu0 %v1754
        %1849 = vmatmul.mubr.bf16.gmra.mrb[0].mxu0 %v1525
        %v1850 = vpop.f32.mrb[0].mxu0
        %v1851 = vadd.f32 0.0, %v1850
        %v1852 = vpop.f32.mrb[0].mxu0
        %v1853 = vadd.f32 0.0, %v1852
        %v1854 = vpop.f32.mrb[0].mxu0
        %v1855 = vadd.f32 0.0, %v1854
        %v1856 = vpop.f32.mrb[0].mxu0
        %v1857 = vadd.f32 0.0, %v1856
        %1858 = vdwg.mxu0
        %1859 = vmatprep.subr.bf16.mxu0 %v1658
        %1860 = vmatpush1.bf16.msra.mxu0 %v1657
        %1861 = vmatprep.subr.bf16.mxu0 %v1662
        %1862 = vmatpush1.bf16.msra.mxu0 %v1661
        %1863 = vmatprep.subr.bf16.mxu0 %v1666
        %1864 = vmatpush1.bf16.msra.mxu0 %v1665
        %1865 = vmatprep.subr.bf16.mxu0 %v1670
        %1866 = vmatpush1.bf16.msra.mxu0 %v1669
        %1867 = vmatprep.subr.bf16.mxu0 %v1674
        %1868 = vmatpush1.bf16.msra.mxu0 %v1673
        %1869 = vmatprep.subr.bf16.mxu0 %v1678
        %1870 = vmatpush1.bf16.msra.mxu0 %v1677
        %1871 = vmatprep.subr.bf16.mxu0 %v1682
        %1872 = vmatpush1.bf16.msra.mxu0 %v1681
        %1873 = vmatprep.subr.bf16.mxu0 %v1686
        %1874 = vmatpush1.bf16.msra.mxu0 %v1685
        %1875 = vmatprep.subr.bf16.mxu0 %v1690
        %1876 = vmatpush1.bf16.msra.mxu0 %v1689
        %1877 = vmatprep.subr.bf16.mxu0 %v1694
        %1878 = vmatpush1.bf16.msra.mxu0 %v1693
        %1879 = vmatprep.subr.bf16.mxu0 0
        %1880 = vmatpush1.bf16.msra.mxu0 0
        %1881 = vmatprep.subr.bf16.mxu0 0
        %1882 = vmatpush1.bf16.msra.mxu0 0
        %1883 = vmatprep.subr.bf16.mxu0 0
        %1884 = vmatpush1.bf16.msra.mxu0 0
        %1885 = vmatprep.subr.bf16.mxu0 0
        %1886 = vmatpush1.bf16.msra.mxu0 0
        %1887 = vmatprep.subr.bf16.mxu0 0
        %1888 = vmatpush1.bf16.msra.mxu0 0
        %1889 = vmatprep.subr.bf16.mxu0 0
        %1890 = vmatpush1.bf16.msra.mxu0 0
        %1891 = vmatprep.mubr.bf16.mxu0 %v1736
        %1892 = vmatmul.mubr.bf16.gmra.mrb[0].mxu0 %v1500
        %v1893 = vpop.f32.mrb[0].mxu0
        %v1894 = vadd.f32 0.0, %v1893
        %v1895 = vpop.f32.mrb[0].mxu0
        %v1896 = vadd.f32 0.0, %v1895
        %v1897 = vpop.f32.mrb[0].mxu0
        %v1898 = vadd.f32 0.0, %v1897
        %v1899 = vpop.f32.mrb[0].mxu0
        %v1900 = vadd.f32 0.0, %v1899
        %1901 = vmatprep.mubr.bf16.mxu0 %v1739
        %1902 = vmatmul.mubr.bf16.gmra.mrb[0].mxu0 %v1505
        %v1903 = vpop.f32.mrb[0].mxu0
        %v1904 = vadd.f32 0.0, %v1903
        %v1905 = vpop.f32.mrb[0].mxu0
        %v1906 = vadd.f32 0.0, %v1905
        %v1907 = vpop.f32.mrb[0].mxu0
        %v1908 = vadd.f32 0.0, %v1907
        %v1909 = vpop.f32.mrb[0].mxu0
        %v1910 = vadd.f32 0.0, %v1909
        %1911 = vmatprep.mubr.bf16.mxu0 %v1742
        %1912 = vmatmul.mubr.bf16.gmra.mrb[0].mxu0 %v1509
        %v1913 = vpop.f32.mrb[0].mxu0
        %v1914 = vadd.f32 0.0, %v1913
        %v1915 = vpop.f32.mrb[0].mxu0
        %v1916 = vadd.f32 0.0, %v1915
        %v1917 = vpop.f32.mrb[0].mxu0
        %v1918 = vadd.f32 0.0, %v1917
        %v1919 = vpop.f32.mrb[0].mxu0
        %v1920 = vadd.f32 0.0, %v1919
        %1921 = vmatprep.mubr.bf16.mxu0 %v1745
        %1922 = vmatmul.mubr.bf16.gmra.mrb[0].mxu0 %v1513
        %v1923 = vpop.f32.mrb[0].mxu0
        %v1924 = vadd.f32 0.0, %v1923
        %v1925 = vpop.f32.mrb[0].mxu0
        %v1926 = vadd.f32 0.0, %v1925
        %v1927 = vpop.f32.mrb[0].mxu0
        %v1928 = vadd.f32 0.0, %v1927
        %v1929 = vpop.f32.mrb[0].mxu0
        %v1930 = vadd.f32 0.0, %v1929
        %1931 = vmatprep.mubr.bf16.mxu0 %v1748
        %1932 = vmatmul.mubr.bf16.gmra.mrb[0].mxu0 %v1517
        %v1933 = vpop.f32.mrb[0].mxu0
        %v1934 = vadd.f32 0.0, %v1933
        %v1935 = vpop.f32.mrb[0].mxu0
        %v1936 = vadd.f32 0.0, %v1935
        %v1937 = vpop.f32.mrb[0].mxu0
        %v1938 = vadd.f32 0.0, %v1937
        %v1939 = vpop.f32.mrb[0].mxu0
        %v1940 = vadd.f32 0.0, %v1939
        %1941 = vmatprep.mubr.bf16.mxu0 %v1751
        %1942 = vmatmul.mubr.bf16.gmra.mrb[0].mxu0 %v1521
        %v1943 = vpop.f32.mrb[0].mxu0
        %v1944 = vadd.f32 0.0, %v1943
        %v1945 = vpop.f32.mrb[0].mxu0
        %v1946 = vadd.f32 0.0, %v1945
        %v1947 = vpop.f32.mrb[0].mxu0
        %v1948 = vadd.f32 0.0, %v1947
        %v1949 = vpop.f32.mrb[0].mxu0
        %v1950 = vadd.f32 0.0, %v1949
        %1951 = vmatprep.mubr.bf16.mxu0 %v1754
        %1952 = vmatmul.mubr.bf16.gmra.mrb[0].mxu0 %v1525
        %v1953 = vpop.f32.mrb[0].mxu0
        %v1954 = vadd.f32 0.0, %v1953
        %v1955 = vpop.f32.mrb[0].mxu0
        %v1956 = vadd.f32 0.0, %v1955
        %v1957 = vpop.f32.mrb[0].mxu0
        %v1958 = vadd.f32 0.0, %v1957
        %v1959 = vpop.f32.mrb[0].mxu0
        %v1960 = vadd.f32 0.0, %v1959
        %1961 = vdwg.mxu0
        %v1962 = vadd.f32 %v1270, %v1791
        %v1963 = vadd.f32 %v1272, %v1793
        %v1964 = vadd.f32 %v1373, %v1894
        %v1965 = vadd.f32 %v1375, %v1896
        %v1966 = vadd.f32 %v1274, %v1795
        %v1967 = vadd.f32 %v1276, %v1797
        %v1968 = vadd.f32 %v1377, %v1898
        %v1969 = vadd.f32 %v1379, %v1900
        %v1970 = vadd.f32 %v1280, %v1801
        %v1971 = vadd.f32 %v1282, %v1803
        %v1972 = vadd.f32 %v1383, %v1904
        %v1973 = vadd.f32 %v1385, %v1906
        %v1974 = vadd.f32 %v1284, %v1805
        %v1975 = vadd.f32 %v1286, %v1807
        %v1976 = vadd.f32 %v1387, %v1908
        %v1977 = vadd.f32 %v1389, %v1910
        %v1978 = vadd.f32 %v1290, %v1811
        %v1979 = vadd.f32 %v1292, %v1813
        %v1980 = vadd.f32 %v1393, %v1914
        %v1981 = vadd.f32 %v1395, %v1916
        %v1982 = vadd.f32 %v1294, %v1815
        %v1983 = vadd.f32 %v1296, %v1817
        %v1984 = vadd.f32 %v1397, %v1918
        %v1985 = vadd.f32 %v1399, %v1920
        %v1986 = vadd.f32 %v1300, %v1821
        %v1987 = vadd.f32 %v1302, %v1823
        %v1988 = vadd.f32 %v1403, %v1924
        %v1989 = vadd.f32 %v1405, %v1926
        %v1990 = vadd.f32 %v1304, %v1825
        %v1991 = vadd.f32 %v1306, %v1827
        %v1992 = vadd.f32 %v1407, %v1928
        %v1993 = vadd.f32 %v1409, %v1930
        %v1994 = vadd.f32 %v1310, %v1831
        %v1995 = vadd.f32 %v1312, %v1833
        %v1996 = vadd.f32 %v1413, %v1934
        %v1997 = vadd.f32 %v1415, %v1936
        %v1998 = vadd.f32 %v1314, %v1835
        %v1999 = vadd.f32 %v1316, %v1837
        %v2000 = vadd.f32 %v1417, %v1938
        %v2001 = vadd.f32 %v1419, %v1940
        %v2002 = vadd.f32 %v1320, %v1841
        %v2003 = vadd.f32 %v1322, %v1843
        %v2004 = vadd.f32 %v1423, %v1944
        %v2005 = vadd.f32 %v1425, %v1946
        %v2006 = vadd.f32 %v1324, %v1845
        %v2007 = vadd.f32 %v1326, %v1847
        %v2008 = vadd.f32 %v1427, %v1948
        %v2009 = vadd.f32 %v1429, %v1950
        %v2010 = vadd.f32 %v1330, %v1851
        %v2011 = vadd.f32 %v1332, %v1853
        %v2012 = vadd.f32 %v1433, %v1954
        %v2013 = vadd.f32 %v1435, %v1956
        %v2014 = vadd.f32 %v1334, %v1855
        %v2015 = vadd.f32 %v1336, %v1857
        %v2016 = vadd.f32 %v1437, %v1958
        %v2017 = vadd.f32 %v1439, %v1960
        %v2018 = vmul.f32 %v1962, %v1962
        %v2019 = vmul.f32 %v1963, %v1963
        %v2020 = vmul.f32 %v1966, %v1966
        %v2021 = vmul.f32 %v1967, %v1967
        %v2022 = vmul.f32 %v1970, %v1970
        %v2023 = vmul.f32 %v1971, %v1971
        %v2024 = vmul.f32 %v1974, %v1974
        %v2025 = vmul.f32 %v1975, %v1975
        %v2026 = vmul.f32 %v1978, %v1978
        %v2027 = vmul.f32 %v1979, %v1979
        %v2028 = vmul.f32 %v1982, %v1982
        %v2029 = vmul.f32 %v1983, %v1983
        %v2030 = vmul.f32 %v1986, %v1986
        %v2031 = vmul.f32 %v1987, %v1987
        %v2032 = vmul.f32 %v1990, %v1990
        %v2033 = vmul.f32 %v1991, %v1991
        %v2034 = vmul.f32 %v1994, %v1994
        %v2035 = vmul.f32 %v1995, %v1995
        %v2036 = vmul.f32 %v1998, %v1998
        %v2037 = vmul.f32 %v1999, %v1999
        %v2038 = vmul.f32 %v2002, %v2002
        %v2039 = vmul.f32 %v2003, %v2003
        %v2040 = vmul.f32 %v2006, %v2006
        %v2041 = vmul.f32 %v2007, %v2007
        %v2042 = vmul.f32 %v2010, %v2010
        %v2043 = vmul.f32 %v2011, %v2011
        %v2044 = vmul.f32 %v2014, %v2014
        %v2045 = vmul.f32 %v2015, %v2015
        %v2046 = vmul.f32 %v1964, %v1964
        %v2047 = vmul.f32 %v1965, %v1965
        %v2048 = vmul.f32 %v1968, %v1968
        %v2049 = vmul.f32 %v1969, %v1969
        %v2050 = vmul.f32 %v1972, %v1972
        %v2051 = vmul.f32 %v1973, %v1973
        %v2052 = vmul.f32 %v1976, %v1976
        %v2053 = vmul.f32 %v1977, %v1977
        %v2054 = vmul.f32 %v1980, %v1980
        %v2055 = vmul.f32 %v1981, %v1981
        %v2056 = vmul.f32 %v1984, %v1984
        %v2057 = vmul.f32 %v1985, %v1985
        %v2058 = vmul.f32 %v1988, %v1988
        %v2059 = vmul.f32 %v1989, %v1989
        %v2060 = vmul.f32 %v1992, %v1992
        %v2061 = vmul.f32 %v1993, %v1993
        %v2062 = vmul.f32 %v1996, %v1996
        %v2063 = vmul.f32 %v1997, %v1997
        %v2064 = vmul.f32 %v2000, %v2000
        %v2065 = vmul.f32 %v2001, %v2001
        %v2066 = vmul.f32 %v2004, %v2004
        %v2067 = vmul.f32 %v2005, %v2005
        %v2068 = vmul.f32 %v2008, %v2008
        %v2069 = vmul.f32 %v2009, %v2009
        %v2070 = vmul.f32 %v2012, %v2012
        %v2071 = vmul.f32 %v2013, %v2013
        %v2072 = vmul.f32 %v2016, %v2016
        %v2073 = vmul.f32 %v2017, %v2017
        %v2074 = vadd.f32 %v2018, %v2046
        %v2075 = vadd.f32 %v2019, %v2047
        %v2076 = vadd.f32 %v2020, %v2048
        %v2077 = vadd.f32 %v2021, %v2049
        %v2078 = vadd.f32 %v2022, %v2050
        %v2079 = vadd.f32 %v2023, %v2051
        %v2080 = vadd.f32 %v2024, %v2052
        %v2081 = vadd.f32 %v2025, %v2053
        %v2082 = vadd.f32 %v2026, %v2054
        %v2083 = vadd.f32 %v2027, %v2055
        %v2084 = vadd.f32 %v2028, %v2056
        %v2085 = vadd.f32 %v2029, %v2057
        %v2086 = vadd.f32 %v2030, %v2058
        %v2087 = vadd.f32 %v2031, %v2059
        %v2088 = vadd.f32 %v2032, %v2060
        %v2089 = vadd.f32 %v2033, %v2061
        %v2090 = vadd.f32 %v2034, %v2062
        %v2091 = vadd.f32 %v2035, %v2063
        %v2092 = vadd.f32 %v2036, %v2064
        %v2093 = vadd.f32 %v2037, %v2065
        %v2094 = vadd.f32 %v2038, %v2066
        %v2095 = vadd.f32 %v2039, %v2067
        %v2096 = vadd.f32 %v2040, %v2068
        %v2097 = vadd.f32 %v2041, %v2069
        %v2098 = vadd.f32 %v2042, %v2070
        %v2099 = vadd.f32 %v2043, %v2071
        %v2100 = vadd.f32 %v2044, %v2072
        %v2101 = vadd.f32 %v2045, %v2073
        %v2102 = vpack.c.bf16 %v2076, %v2074
        %v2103 = vpack.c.bf16 %v2077, %v2075
        %v2104 = vpack.c.bf16 %v2080, %v2078
        %v2105 = vpack.c.bf16 %v2081, %v2079
        %v2106 = vpack.c.bf16 %v2084, %v2082
        %v2107 = vpack.c.bf16 %v2085, %v2083
        %v2108 = vpack.c.bf16 %v2088, %v2086
        %v2109 = vpack.c.bf16 %v2089, %v2087
        %v2110 = vpack.c.bf16 %v2092, %v2090
        %v2111 = vpack.c.bf16 %v2093, %v2091
        %v2112 = vpack.c.bf16 %v2096, %v2094
        %v2113 = vpack.c.bf16 %v2097, %v2095
        %v2114 = vpack.c.bf16 %v2100, %v2098
        %v2115 = vpack.c.bf16 %v2101, %v2099
        %v2116 = vld [vmem:[%s3] sm:$0xf]
        %v2117 = vld [vmem:[%s3 + $0x4] sm:$0xf]
        %v2118 = vld [vmem:[%s3 + $0x8] sm:$0xf]
        %v2119 = vld [vmem:[%s3 + $0xc] sm:$0xf]
        %v2120 = vld [vmem:[%s3 + $0x10] sm:$0xf]
        %v2121 = vld [vmem:[%s3 + $0x14] sm:$0xf]
        %v2122 = vld [vmem:[%s3 + $0x18] sm:$0xf]
        %v2123 = vld [vmem:[%s3 + $0x1c] sm:$0xf]
        %v2124 = vld [vmem:[%s3 + $0x20] sm:$0xf]
        %v2125 = vld [vmem:[%s3 + $0x24] sm:$0xf]
        %v2126 = vld [vmem:[%s3 + $0x28] sm:$0xf]
        %v2127 = vld [vmem:[%s3 + $0x2c] sm:$0xf]
        %v2128 = vld [vmem:[%s3 + $0x30] sm:$0xf]
        %v2129 = vld [vmem:[%s3 + $0x34] sm:$0xf]
        %v2130 = vld [vmem:[%s3 + $0x38] sm:$0xf]
        %v2131 = vld [vmem:[%s3 + $0x3c] sm:$0xf]
        %v2132 = vld [vmem:[%s3 + $0x40] sm:$0xf]
        %v2133 = vld [vmem:[%s3 + $0x44] sm:$0xf]
        %v2134 = vld [vmem:[%s3 + $0x48] sm:$0xf]
        %v2135 = vld [vmem:[%s3 + $0x4c] sm:$0xf]
        %v2136 = vld [vmem:[%s3 + $0x50] sm:$0xf]
        %v2137 = vld [vmem:[%s3 + $0x54] sm:$0xf]
        %v2138 = vld [vmem:[%s3 + $0x58] sm:$0xf]
        %v2139 = vld [vmem:[%s3 + $0x5c] sm:$0xf]
        %v2140 = vld [vmem:[%s3 + $0x60] sm:$0xf]
        %v2141 = vld [vmem:[%s3 + $0x64] sm:$0xf]
        %v2142 = vld [vmem:[%s3 + $0x68] sm:$0xf]
        %v2143 = vld [vmem:[%s3 + $0x6c] sm:$0xf]
        %v2144 = vld [vmem:[%s3 + $0x70] sm:$0xf]
        %v2145 = vld [vmem:[%s3 + $0x74] sm:$0xf]
        %v2146 = vld [vmem:[%s3 + $0x78] sm:$0xf]
        %v2147 = vld [vmem:[%s3 + $0x7c] sm:$0xf]
        %v2180 = vunpack.c.l.b16 %v2116
        %v2181 = vunpack.c.l.b16 %v2117
        %v2182 = vunpack.c.l.b16 %v2118
        %v2183 = vunpack.c.l.b16 %v2119
        %v2184 = vunpack.c.l.b16 %v2120
        %v2185 = vunpack.c.l.b16 %v2121
        %v2186 = vunpack.c.l.b16 %v2122
        %v2187 = vunpack.c.l.b16 %v2123
        %v2188 = vunpack.c.l.b16 %v2124
        %v2189 = vunpack.c.l.b16 %v2125
        %v2190 = vunpack.c.l.b16 %v2126
        %v2191 = vunpack.c.l.b16 %v2127
        %v2192 = vunpack.c.l.b16 %v2128
        %v2193 = vunpack.c.l.b16 %v2129
        %v2194 = vunpack.c.l.b16 %v2130
        %v2195 = vunpack.c.l.b16 %v2131
        %v2196 = vunpack.c.l.b16 %v2132
        %v2197 = vunpack.c.l.b16 %v2133
        %v2198 = vunpack.c.l.b16 %v2134
        %v2199 = vunpack.c.l.b16 %v2135
        %v2200 = vunpack.c.l.b16 %v2136
        %v2201 = vunpack.c.l.b16 %v2137
        %v2202 = vunpack.c.l.b16 %v2138
        %v2203 = vunpack.c.l.b16 %v2139
        %v2204 = vunpack.c.l.b16 %v2140
        %v2205 = vunpack.c.l.b16 %v2141
        %v2206 = vunpack.c.l.b16 %v2142
        %v2207 = vunpack.c.l.b16 %v2143
        %v2208 = vunpack.c.l.b16 %v2144
        %v2209 = vunpack.c.l.b16 %v2145
        %v2210 = vunpack.c.l.b16 %v2146
        %v2211 = vunpack.c.l.b16 %v2147
        %v2212 = vpack.c.b16 %v2181, %v2180
        %v2213 = vpack.c.b16 %v2183, %v2182
        %v2214 = vpack.c.b16 %v2185, %v2184
        %v2215 = vpack.c.b16 %v2187, %v2186
        %v2216 = vpack.c.b16 %v2189, %v2188
        %v2217 = vpack.c.b16 %v2191, %v2190
        %v2218 = vpack.c.b16 %v2193, %v2192
        %v2219 = vpack.c.b16 %v2195, %v2194
        %v2220 = vpack.c.b16 %v2197, %v2196
        %v2221 = vpack.c.b16 %v2199, %v2198
        %v2222 = vpack.c.b16 %v2201, %v2200
        %v2223 = vpack.c.b16 %v2203, %v2202
        %v2224 = vpack.c.b16 %v2205, %v2204
        %v2225 = vpack.c.b16 %v2207, %v2206
        %v2226 = vpack.c.b16 %v2209, %v2208
        %v2227 = vpack.c.b16 %v2211, %v2210
        %2244 = vmatprep.subr.bf16.mxu0 0
        %2245 = vmatpush1.bf16.msra.mxu0 %v2212
        %2246 = vmatprep.subr.bf16.mxu0 0
        %2247 = vmatpush1.bf16.msra.mxu0 %v2213
        %2248 = vmatprep.subr.bf16.mxu0 0
        %2249 = vmatpush1.bf16.msra.mxu0 %v2214
        %2250 = vmatprep.subr.bf16.mxu0 0
        %2251 = vmatpush1.bf16.msra.mxu0 %v2215
        %2252 = vmatprep.subr.bf16.mxu0 0
        %2253 = vmatpush1.bf16.msra.mxu0 %v2216
        %2254 = vmatprep.subr.bf16.mxu0 0
        %2255 = vmatpush1.bf16.msra.mxu0 %v2217
        %2256 = vmatprep.subr.bf16.mxu0 0
        %2257 = vmatpush1.bf16.msra.mxu0 %v2218
        %2258 = vmatprep.subr.bf16.mxu0 0
        %2259 = vmatpush1.bf16.msra.mxu0 %v2219
        %2260 = vmatprep.subr.bf16.mxu0 0
        %2261 = vmatpush1.bf16.msra.mxu0 %v2220
        %2262 = vmatprep.subr.bf16.mxu0 0
        %2263 = vmatpush1.bf16.msra.mxu0 %v2221
        %2264 = vmatprep.subr.bf16.mxu0 0
        %2265 = vmatpush1.bf16.msra.mxu0 %v2222
        %2266 = vmatprep.subr.bf16.mxu0 0
        %2267 = vmatpush1.bf16.msra.mxu0 %v2223
        %2268 = vmatprep.subr.bf16.mxu0 0
        %2269 = vmatpush1.bf16.msra.mxu0 %v2224
        %2270 = vmatprep.subr.bf16.mxu0 0
        %2271 = vmatpush1.bf16.msra.mxu0 %v2225
        %2272 = vmatprep.subr.bf16.mxu0 0
        %2273 = vmatpush1.bf16.msra.mxu0 %v2226
        %2274 = vmatprep.subr.bf16.mxu0 0
        %2275 = vmatpush1.bf16.msra.mxu0 %v2227
        %2276 = vmatprep.mubr.bf16.mxu0 %v2103
        %2277 = vmatmul.mubr.bf16.gmra.mrb[0].mxu0 %v2102
        %v2278 = vpop.f32.mrb[0].mxu0
        %v2279 = vadd.f32 0.0, %v2278
        %v2280 = vpop.f32.mrb[0].mxu0
        %v2281 = vpop.f32.mrb[0].mxu0
        %v2282 = vadd.f32 0.0, %v2281
        %v2283 = vpop.f32.mrb[0].mxu0
        %2284 = vmatprep.mubr.bf16.mxu0 %v2105
        %2285 = vmatmul.mubr.bf16.gmra.mrb[0].mxu0 %v2104
        %v2286 = vpop.f32.mrb[0].mxu0
        %v2287 = vadd.f32 0.0, %v2286
        %v2288 = vpop.f32.mrb[0].mxu0
        %v2289 = vpop.f32.mrb[0].mxu0
        %v2290 = vadd.f32 0.0, %v2289
        %v2291 = vpop.f32.mrb[0].mxu0
        %2292 = vmatprep.mubr.bf16.mxu0 %v2107
        %2293 = vmatmul.mubr.bf16.gmra.mrb[0].mxu0 %v2106
        %v2294 = vpop.f32.mrb[0].mxu0
        %v2295 = vadd.f32 0.0, %v2294
        %v2296 = vpop.f32.mrb[0].mxu0
        %v2297 = vpop.f32.mrb[0].mxu0
        %v2298 = vadd.f32 0.0, %v2297
        %v2299 = vpop.f32.mrb[0].mxu0
        %2300 = vmatprep.mubr.bf16.mxu0 %v2109
        %2301 = vmatmul.mubr.bf16.gmra.mrb[0].mxu0 %v2108
        %v2302 = vpop.f32.mrb[0].mxu0
        %v2303 = vadd.f32 0.0, %v2302
        %v2304 = vpop.f32.mrb[0].mxu0
        %v2305 = vpop.f32.mrb[0].mxu0
        %v2306 = vadd.f32 0.0, %v2305
        %v2307 = vpop.f32.mrb[0].mxu0
        %2308 = vmatprep.mubr.bf16.mxu0 %v2111
        %2309 = vmatmul.mubr.bf16.gmra.mrb[0].mxu0 %v2110
        %v2310 = vpop.f32.mrb[0].mxu0
        %v2311 = vadd.f32 0.0, %v2310
        %v2312 = vpop.f32.mrb[0].mxu0
        %v2313 = vpop.f32.mrb[0].mxu0
        %v2314 = vadd.f32 0.0, %v2313
        %v2315 = vpop.f32.mrb[0].mxu0
        %2316 = vmatprep.mubr.bf16.mxu0 %v2113
        %2317 = vmatmul.mubr.bf16.gmra.mrb[0].mxu0 %v2112
        %v2318 = vpop.f32.mrb[0].mxu0
        %v2319 = vadd.f32 0.0, %v2318
        %v2320 = vpop.f32.mrb[0].mxu0
        %v2321 = vpop.f32.mrb[0].mxu0
        %v2322 = vadd.f32 0.0, %v2321
        %v2323 = vpop.f32.mrb[0].mxu0
        %2324 = vmatprep.mubr.bf16.mxu0 %v2115
        %2325 = vmatmul.mubr.bf16.gmra.mrb[0].mxu0 %v2114
        %v2326 = vpop.f32.mrb[0].mxu0
        %v2327 = vadd.f32 0.0, %v2326
        %v2328 = vpop.f32.mrb[0].mxu0
        %v2329 = vpop.f32.mrb[0].mxu0
        %v2330 = vadd.f32 0.0, %v2329
        %v2331 = vpop.f32.mrb[0].mxu0
        %2332 = vdwg.mxu0
        %v2333 = vmax.f32 %v2279, 1e-10
        %v2334 = vmax.f32 %v2282, 1e-10
        %v2335 = vmax.f32 %v2287, 1e-10
        %v2336 = vmax.f32 %v2290, 1e-10
        %v2337 = vmax.f32 %v2295, 1e-10
        %v2338 = vmax.f32 %v2298, 1e-10
        %v2339 = vmax.f32 %v2303, 1e-10
        %v2340 = vmax.f32 %v2306, 1e-10
        %v2341 = vmax.f32 %v2311, 1e-10
        %v2342 = vmax.f32 %v2314, 1e-10
        %v2343 = vmax.f32 %v2319, 1e-10
        %v2344 = vmax.f32 %v2322, 1e-10
        %v2345 = vmax.f32 %v2327, 1e-10
        %v2346 = vmax.f32 %v2330, 1e-10
        %v2347 = vlog2.pop %v2333
        %v2348 = vmul.f32 %v2347, 0.6931472
        %v2349 = vlog2.pop %v2334
        %v2350 = vmul.f32 %v2349, 0.6931472
        %v2351 = vlog2.pop %v2335
        %v2352 = vmul.f32 %v2351, 0.6931472
        %v2353 = vlog2.pop %v2336
        %v2354 = vmul.f32 %v2353, 0.6931472
        %v2355 = vlog2.pop %v2337
        %v2356 = vmul.f32 %v2355, 0.6931472
        %v2357 = vlog2.pop %v2338
        %v2358 = vmul.f32 %v2357, 0.6931472
        %v2359 = vlog2.pop %v2339
        %v2360 = vmul.f32 %v2359, 0.6931472
        %v2361 = vlog2.pop %v2340
        %v2362 = vmul.f32 %v2361, 0.6931472
        %v2363 = vlog2.pop %v2341
        %v2364 = vmul.f32 %v2363, 0.6931472
        %v2365 = vlog2.pop %v2342
        %v2366 = vmul.f32 %v2365, 0.6931472
        %v2367 = vlog2.pop %v2343
        %v2368 = vmul.f32 %v2367, 0.6931472
        %v2369 = vlog2.pop %v2344
        %v2370 = vmul.f32 %v2369, 0.6931472
        %v2371 = vlog2.pop %v2345
        %v2372 = vmul.f32 %v2371, 0.6931472
        %v2373 = vlog2.pop %v2346
        %v2374 = vmul.f32 %v2373, 0.6931472
        %v2375 = vmul.f32 %v2348, 0.4342945
        %v2376 = vmul.f32 %v2350, 0.4342945
        %v2377 = vmul.f32 %v2352, 0.4342945
        %v2378 = vmul.f32 %v2354, 0.4342945
        %v2379 = vmul.f32 %v2356, 0.4342945
        %v2380 = vmul.f32 %v2358, 0.4342945
        %v2381 = vmul.f32 %v2360, 0.4342945
        %v2382 = vmul.f32 %v2362, 0.4342945
        %v2383 = vmul.f32 %v2364, 0.4342945
        %v2384 = vmul.f32 %v2366, 0.4342945
        %v2385 = vmul.f32 %v2368, 0.4342945
        %v2386 = vmul.f32 %v2370, 0.4342945
        %v2387 = vmul.f32 %v2372, 0.4342945
        %v2388 = vmul.f32 %v2374, 0.4342945
        %v2389 = vmul.f32 %v2375, 10.0
        %v2390 = vmul.f32 %v2376, 10.0
        %v2391 = vmul.f32 %v2377, 10.0
        %v2392 = vmul.f32 %v2378, 10.0
        %v2393 = vmul.f32 %v2379, 10.0
        %v2394 = vmul.f32 %v2380, 10.0
        %v2395 = vmul.f32 %v2381, 10.0
        %v2396 = vmul.f32 %v2382, 10.0
        %v2397 = vmul.f32 %v2383, 10.0
        %v2398 = vmul.f32 %v2384, 10.0
        %v2399 = vmul.f32 %v2385, 10.0
        %v2400 = vmul.f32 %v2386, 10.0
        %v2401 = vmul.f32 %v2387, 10.0
        %v2402 = vmul.f32 %v2388, 10.0
        %2403 = vst [vmem:[%s285] sm:$0xff] %v2389
        %2404 = vst [vmem:[%s285 + $0x8] sm:$0xff] %v2390
        %2405 = vst [vmem:[%s285 + $0x10] sm:$0xff] %v2391
        %2406 = vst [vmem:[%s285 + $0x18] sm:$0xff] %v2392
        %2407 = vst [vmem:[%s285 + $0x20] sm:$0xff] %v2393
        %2408 = vst [vmem:[%s285 + $0x28] sm:$0xff] %v2394
        %2409 = vst [vmem:[%s285 + $0x30] sm:$0xff] %v2395
        %2410 = vst [vmem:[%s285 + $0x38] sm:$0xff] %v2396
        %2411 = vst [vmem:[%s285 + $0x40] sm:$0xff] %v2397
        %2412 = vst [vmem:[%s285 + $0x48] sm:$0xff] %v2398
        %2413 = vst [vmem:[%s285 + $0x50] sm:$0xff] %v2399
        %2414 = vst [vmem:[%s285 + $0x58] sm:$0xff] %v2400
        %2415 = vst [vmem:[%s285 + $0x60] sm:$0xff] %v2401
        %2416 = vst [vmem:[%s285 + $0x68] sm:$0xff] %v2402
        %s2417 = sand.u32 %s143, 1
        %s2418 = scalar_lea.sflag [#allocation4], %s2417
        %s2419 = sand.u32 %s143, 1
        %s2420 = smul.addr %s2419, 112
        %s2421 = scalar_lea.vmem [#allocation5], %s2420
        // Predicated region
        $region41: #{tpu_custom_call.1} parent=35 // pred_check
          %p2422 = pneg %p153
        $region42: #{tpu_custom_call.1} parent=35 // pred_check_branch
          %2424 = sbr.rel (%p2422) target = $region44
        $region43: #{tpu_custom_call.1} parent=35 // pred_region
          %s2425 = smul.u32 14, %s24
          %s2427 = ssub.s32 1792, 1792
          %2428 = vsyncadd %s2418, %s2427
          %s2429 = smul.addr %s23, 14
          %s2430 = sadd.s32 %s2425, %s2429
          %s2431 = smul.addr %s2430, 128
          %s2432 = scalar_lea.hbm %s4, %s2431
          %s2433 = sshll.u32 %s2421, 4
          %s2434 = int_to_ptr.vmem [resolvable:$true] %s2433
          %2439 = dma.vmem_to_hbm [thread:$0]  %s2434, 1792, %s2432, %s2418, 128, 128, 8
        $region44: #{tpu_custom_call.1} parent=35 // pred_fallthru
          _
      $region36: #{tpu_custom_call.1} parent=5 // pred_fallthru
        _
      %p2440 = scmp.le.s32.totalorder 2, %s14
      // Predicated region
      $region45: #{tpu_custom_call.1} parent=5 // pred_check
        %p2441 = pneg %p2440
      $region46: #{tpu_custom_call.1} parent=5 // pred_check_branch
        %2443 = sbr.rel (%p2441) target = $region48
      $region47: #{tpu_custom_call.1} parent=5 // pred_region
        %s2444 = ssub.s32 %s14, 2
        // Predicated region
        $region49: #{tpu_custom_call.1} parent=47 // pred_check
          %p2445 = pneg %p159
        $region50: #{tpu_custom_call.1} parent=47 // pred_check_branch
          %2447 = sbr.rel (%p2445) target = $region52
        $region51: #{tpu_custom_call.1} parent=47 // pred_region
          %s2448 = sand.u32 %s144, 1
          %s2449 = scalar_lea.sflag [#allocation4], %s2448
          %s2450 = sand.u32 %s144, 1
          %s2451 = smul.addr %s2450, 112
          %s2452 = scalar_lea.vmem [#allocation5], %s2451
          %2453 = dma.done %s2449, 1792
        $region52: #{tpu_custom_call.1} parent=47 // pred_fallthru
          _
      $region48: #{tpu_custom_call.1} parent=5 // pred_fallthru
        _
    $region6: #{tpu_custom_call.1} parent=1 // loop_footer
      %s18 = sadd.s32 1, %s14
    $region7: #{tpu_custom_call.1} parent=1 // loop_footer_branch
      %13 = sbr.rel target = $region3
    $region8: #{tpu_custom_call.1} parent=1 // loop_exit
      _
    %2454 = vsyncpa [#allocation3], 1
    %s2455 = scalar_lea.sflag [#allocation3], 1
    %2456 = vsyncpa %s2455, 1
    %2457 = vsyncpa [#allocation4], 1
    %s2458 = scalar_lea.sflag [#allocation4], 1
    %2459 = vsyncpa %s2458, 1

</llo_original>
